<compile_context>
chip_gen: v5e
topology: v5e:2x2
jax: 0.10.0
libtpu: 0.0.40
codegen_flags: <defaults>
</compile_context>

<pallas_src>
import functools

import numpy as np
import jax
import jax.numpy as jnp
from jax.experimental import pallas as pl
from jax.experimental.pallas import tpu as pltpu


# --------------------------------------------------------------------------
# tiling helpers
# --------------------------------------------------------------------------
def _row_tile(m, target):
    """Largest multiple-of-8 divisor of m that is <= target (else m itself)."""
    if m <= target:
        return m
    t = min(target, m)
    for bm in range(t - t % 8, 7, -8):
        if m % bm == 0:
            return bm
    # TODO(synk): pad m to a tile multiple + mask instead of one giant block.
    return m


def _col_tile(n, target):
    """Largest multiple-of-128 divisor of n that is <= target (else n)."""
    if n <= target:
        return n
    t = min(target, n)
    for bk in range(t - t % 128, 127, -128):
        if n % bk == 0:
            return bk
    return n


def _roll_lanes(z, shift):
    """out[:, p] = z[:, (p - shift) mod n]  (jnp.roll semantics, static shift)."""
    n = z.shape[-1]
    shift = shift % n
    if shift == 0:
        return z
    return jnp.concatenate([z[:, n - shift:], z[:, :n - shift]], axis=-1)


# --------------------------------------------------------------------------
# generic matmul + bias (+ SiLU) kernel  (convs via im2col, patch embed)
# --------------------------------------------------------------------------
def _matmul_bias_kernel(x_ref, w_ref, b_ref, o_ref, *, apply_silu):
    y = jnp.dot(x_ref[...].astype(jnp.bfloat16), w_ref[...],
                preferred_element_type=jnp.float32)
    y = y + b_ref[...]
    if apply_silu:
        y = y * jax.nn.sigmoid(y)
    o_ref[...] = y.astype(o_ref.dtype)


def matmul_bias(x, w, b, apply_silu=False, out_dtype=jnp.float32):
    """(M, K) @ (K, N) + b, optionally SiLU.  Row-tiled, parallel grid."""
    M, K = x.shape
    N = w.shape[1]
    bm = _row_tile(M, 512)
    return pl.pallas_call(
        functools.partial(_matmul_bias_kernel, apply_silu=apply_silu),
        out_shape=jax.ShapeDtypeStruct((M, N), out_dtype),
        grid=(M // bm,),
        in_specs=[
            pl.BlockSpec((bm, K), lambda i: (i, 0)),
            pl.BlockSpec((K, N), lambda i: (0, 0)),
            pl.BlockSpec((1, N), lambda i: (0, 0)),
        ],
        out_specs=pl.BlockSpec((bm, N), lambda i: (i, 0)),
        compiler_params=pltpu.CompilerParams(dimension_semantics=("parallel",)),
    )(x, w, b.reshape(1, N))


# --------------------------------------------------------------------------
# fused RMSNorm + QKV projection + qk-LayerNorm + rotate-half RoPE (+ q scale)
# --------------------------------------------------------------------------
def _qkv_rope_kernel(x_ref, cos_ref, sina_ref, sinb_ref, nw_ref, wqkv_ref,
                     bqkv_ref, lqw_ref, lqb_ref, lkw_ref, lkb_ref,
                     q_ref, k_ref, v_ref, *, dim, kv, dh, rms_eps, ln_eps, scale):
    x = x_ref[...]
    # block RMSNorm (f32 stats)
    var = jnp.mean(x * x, axis=-1, keepdims=True)
    xn = x * jax.lax.rsqrt(var + rms_eps) * nw_ref[...]
    # fused q|k|v projection (bf16 operands, f32 accumulation); q/k columns are
    # pre-permuted offline to the per-head split (reals|imags) layout.
    y = jnp.dot(xn.astype(jnp.bfloat16), wqkv_ref[...],
                preferred_element_type=jnp.float32) + bqkv_ref[...]
    q = y[:, :dim]
    k = y[:, dim:dim + kv]
    v = y[:, dim + kv:]

    def _ln(z, w, b):
        mu = jnp.mean(z, axis=-1, keepdims=True)
        zc = z - mu
        v2 = jnp.mean(zc * zc, axis=-1, keepdims=True)
        return zc * jax.lax.rsqrt(v2 + ln_eps) * w + b

    q = _ln(q, lqw_ref[...], lqb_ref[...])      # layer_norm_across_heads
    k = _ln(k, lkw_ref[...], lkb_ref[...])

    # Rotate-half RoPE in the split per-head layout:
    #   first half of a head :  q*cos - q[second half]*sin
    #   second half of a head:  q*cos + q[first  half]*sin
    # implemented as two static lane rotations; the sign and the "wrong head"
    # wrap positions are zeroed by the precomputed sin_a / sin_b tables.
    cos = cos_ref[...]
    sa = sina_ref[...]      # (-sin on first-half lanes, 0 elsewhere)
    sb = sinb_ref[...]      # (+sin on second-half lanes, 0 elsewhere)
    q = (q * cos
         + _roll_lanes(q, dim - dh) * sa        # q[p + dh]
         + _roll_lanes(q, dh) * sb)             # q[p - dh]
    k = (k * cos[:, :kv]
         + _roll_lanes(k, kv - dh) * sa[:, :kv]
         + _roll_lanes(k, dh) * sb[:, :kv])

    q_ref[...] = (q * scale).astype(jnp.bfloat16)   # fold 1/sqrt(head_dim)
    k_ref[...] = k.astype(jnp.bfloat16)
    v_ref[...] = v.astype(jnp.bfloat16)


def qkv_project(hs, cos_t, sina_t, sinb_t, lp, dim, kv_dim, head_dim,
                rms_eps, scale):
    B, L, _ = hs.shape
    bm = _row_tile(L, 256)
    nqkv = dim + 2 * kv_dim
    rowmap = lambda b, i: (b, i, 0)
    ropemap = lambda b, i: (i, 0)
    const = lambda b, i: (0, 0)
    kern = functools.partial(_qkv_rope_kernel, dim=dim, kv=kv_dim,
                             dh=head_dim // 2, rms_eps=rms_eps,
                             ln_eps=1e-5, scale=scale)
    # NOTE: qk-LayerNorm eps is 1e-5 (the Attention module is built with eps=1e-05).
    return pl.pallas_call(
        kern,
        out_shape=(jax.ShapeDtypeStruct((B, L, dim), jnp.bfloat16),
                   jax.ShapeDtypeStruct((B, L, kv_dim), jnp.bfloat16),
                   jax.ShapeDtypeStruct((B, L, kv_dim), jnp.bfloat16)),
        grid=(B, L // bm),
        in_specs=[
            pl.BlockSpec((None, bm, dim), rowmap),   # hidden states
            pl.BlockSpec((bm, dim), ropemap),        # cos   (shared across batch)
            pl.BlockSpec((bm, dim), ropemap),        # sin_a
            pl.BlockSpec((bm, dim), ropemap),        # sin_b
            pl.BlockSpec((1, dim), const),           # attn RMSNorm weight
            pl.BlockSpec((dim, nqkv), const),        # fused wqkv (perm-folded)
            pl.BlockSpec((1, nqkv), const),          # fused bias
            pl.BlockSpec((1, dim), const),           # norm_q weight (perm-folded)
            pl.BlockSpec((1, dim), const),           # norm_q bias
            pl.BlockSpec((1, kv_dim), const),        # norm_k weight (perm-folded)
            pl.BlockSpec((1, kv_dim), const),        # norm_k bias
        ],
        out_specs=(pl.BlockSpec((None, bm, dim), rowmap),
                   pl.BlockSpec((None, bm, kv_dim), rowmap),
                   pl.BlockSpec((None, bm, kv_dim), rowmap)),
        compiler_params=pltpu.CompilerParams(
            dimension_semantics=("parallel", "parallel"),
            vmem_limit_bytes=64 * 1024 * 1024),
    )(hs, cos_t, sina_t, sinb_t,
      lp["norm_w"].reshape(1, dim), lp["wqkv"], lp["bqkv"].reshape(1, nqkv),
      lp["normq_w"].reshape(1, dim), lp["normq_b"].reshape(1, dim),
      lp["normk_w"].reshape(1, kv_dim), lp["normk_b"].reshape(1, kv_dim))


# --------------------------------------------------------------------------
# attention on lane-dense (B, L, H*D) tensors + fused first residual add
# --------------------------------------------------------------------------
def _attn_kernel(hs_ref, q_ref, k_ref, v_ref, o_ref, *, heads, rep, head_dim):
    # scale already folded into q; attention_mask is all-ones -> no-op.
    outs = []
    for h in range(heads):
        kvh = h // rep                                        # GQA kv head
        qh = q_ref[:, h * head_dim:(h + 1) * head_dim]        # (bq, D) bf16
        kh = k_ref[:, kvh * head_dim:(kvh + 1) * head_dim]    # (L, D)  bf16
        vh = v_ref[:, kvh * head_dim:(kvh + 1) * head_dim]
        s = jax.lax.dot_general(qh, kh, (((1,), (1,)), ((), ())),
                                preferred_element_type=jnp.float32)   # (bq, L)
        m = jnp.max(s, axis=-1, keepdims=True)
        p = jnp.exp(s - m)
        denom = jnp.sum(p, axis=-1, keepdims=True)
        o = jnp.dot(p.astype(jnp.bfloat16), vh,
                    preferred_element_type=jnp.float32)               # (bq, D)
        outs.append(o * pl.reciprocal(denom, approx=True))            # post-PV scale
    # single lane-dense store + fused first residual add
    o_ref[...] = hs_ref[...] + jnp.concatenate(outs, axis=-1)


def attention_residual(hs, q, k, v, heads, head_dim):
    """hs: (B, L, dim) f32; q: (B, L, dim) bf16; k, v: (B, L, kv_dim) bf16.
    Returns hs + attention (B, L, dim) f32."""
    B, L, dim = hs.shape
    kv_dim = k.shape[-1]
    rep = heads // (kv_dim // head_dim)
    bq = _row_tile(L, 256)
    qmap = lambda b, i: (b, i, 0)
    kvmap = lambda b, i: (b, 0, 0)
    # TODO(synk): flash-style KV tiling (online softmax) for large L.
    return pl.pallas_call(
        functools.partial(_attn_kernel, heads=heads, rep=rep, head_dim=head_dim),
        out_shape=jax.ShapeDtypeStruct((B, L, dim), jnp.float32),
        grid=(B, L // bq),
        in_specs=[pl.BlockSpec((None, bq, dim), qmap),
                  pl.BlockSpec((None, bq, dim), qmap),
                  pl.BlockSpec((None, L, kv_dim), kvmap),
                  pl.BlockSpec((None, L, kv_dim), kvmap)],
        out_specs=pl.BlockSpec((None, bq, dim), qmap),
        compiler_params=pltpu.CompilerParams(
            dimension_semantics=("parallel", "parallel"),
            vmem_limit_bytes=64 * 1024 * 1024),
    )(hs, q, k, v)


# --------------------------------------------------------------------------
# fused ffn RMSNorm + SwiGLU FFN (inner-tiled) + residual + adapter_out
# --------------------------------------------------------------------------
def _ffn_adapter_kernel(h_ref, nw_ref, w1_ref, b1_ref, w3_ref, b3_ref,
                        w2_ref, b2_ref, aw_ref, ab_ref, hs_ref, feat_ref,
                        y_sc, acc_sc, *, rms_eps):
    j = pl.program_id(1)

    @pl.when(j == 0)
    def _():
        h = h_ref[...]                                    # hs + attention (f32)
        var = jnp.mean(h * h, axis=-1, keepdims=True)
        y_sc[...] = (h * jax.lax.rsqrt(var + rms_eps) * nw_ref[...]
                     ).astype(jnp.bfloat16)               # ffn_norm (RMSNorm)
        acc_sc[...] = jnp.zeros_like(acc_sc)

    yb = y_sc[...]
    h1 = jnp.dot(yb, w1_ref[...], preferred_element_type=jnp.float32) + b1_ref[...]
    h3 = jnp.dot(yb, w3_ref[...], preferred_element_type=jnp.float32) + b3_ref[...]
    g = (h1 * jax.nn.sigmoid(h1)) * h3                    # SwiGLU gate (f32)
    acc_sc[...] += jnp.dot(g.astype(jnp.bfloat16), w2_ref[...],
                           preferred_element_type=jnp.float32)

    @pl.when(j == pl.num_programs(1) - 1)
    def _():
        hs_new = h_ref[...] + acc_sc[...] + b2_ref[...]   # second residual
        hs_ref[...] = hs_new
        feat_ref[...] = jnp.dot(hs_new.astype(jnp.bfloat16), aw_ref[...],
                                preferred_element_type=jnp.float32) + ab_ref[...]


def ffn_adapter(h2d, lp, rms_eps):
    M, dim = h2d.shape
    inner = lp["w1"].shape[1]
    bm = _row_tile(M, 256)
    bk = _col_tile(inner, 1024)                 # inner tiled (v7x VMEM budget)
    row = lambda i, j: (i, 0)
    const = lambda i, j: (0, 0)
    colw = lambda i, j: (0, j)
    roww = lambda i, j: (j, 0)
    # TODO(synk): column-tile adapter_w as well for production hidden sizes.
    return pl.pallas_call(
        functools.partial(_ffn_adapter_kernel, rms_eps=rms_eps),
        out_shape=(jax.ShapeDtypeStruct((M, dim), jnp.float32),
                   jax.ShapeDtypeStruct((M, dim), jnp.float32)),
        grid=(M // bm, inner // bk),
        in_specs=[
            pl.BlockSpec((bm, dim), row),       # h = hs + attention
            pl.BlockSpec((1, dim), const),      # ffn_norm weight
            pl.BlockSpec((dim, bk), colw),      # w1 column tile
            pl.BlockSpec((1, bk), colw),        # b1
            pl.BlockSpec((dim, bk), colw),      # w3 column tile
            pl.BlockSpec((1, bk), colw),        # b3
            pl.BlockSpec((bk, dim), roww),      # w2 row tile
            pl.BlockSpec((1, dim), const),      # b2
            pl.BlockSpec((dim, dim), const),    # adapter_out weight
            pl.BlockSpec((1, dim), const),      # adapter_out bias
        ],
        out_specs=(pl.BlockSpec((bm, dim), row),
                   pl.BlockSpec((bm, dim), row)),
        scratch_shapes=[pltpu.VMEM((bm, dim), jnp.bfloat16),
                        pltpu.VMEM((bm, dim), jnp.float32)],
        compiler_params=pltpu.CompilerParams(
            dimension_semantics=("parallel", "arbitrary"),
            vmem_limit_bytes=64 * 1024 * 1024),
    )(h2d, lp["ffn_norm_w"].reshape(1, dim),
      lp["w1"], lp["b1"].reshape(1, inner),
      lp["w3"], lp["b3"].reshape(1, inner),
      lp["w2"], lp["b2"].reshape(1, dim),
      lp["adapter_w"], lp["adapter_b"].reshape(1, dim))


# --------------------------------------------------------------------------
# glue: stride-aware im2col conv / block orchestration
# --------------------------------------------------------------------------
def conv3x3(x, w_flat, b, stride, apply_silu):
    """3x3 conv, pad=1, arbitrary stride, NHWC, bf16 activations.  Patches are
    built only at the strided output positions (no wasted MXU work)."""
    B, H, W, Cin = x.shape
    Cout = w_flat.shape[-1]
    Ho, Wo = H // stride, W // stride
    xp = jnp.pad(x, ((0, 0), (1, 1), (1, 1), (0, 0)))
    cols = [xp[:, dy:dy + (Ho - 1) * stride + 1:stride,
               dx:dx + (Wo - 1) * stride + 1:stride, :]
            for dy in range(3) for dx in range(3)]
    patches = jnp.concatenate(cols, axis=-1).reshape(B * Ho * Wo, 9 * Cin)
    y = matmul_bias(patches.astype(jnp.bfloat16), w_flat, b,
                    apply_silu=apply_silu, out_dtype=jnp.bfloat16)
    return y.reshape(B, Ho, Wo, Cout)
    # TODO(synk): fuse the whole conv stack into one VMEM-resident pallas_call.


def _adapter_block(hs, lp, cos_t, sina_t, sinb_t, heads, kv_heads, head_dim, eps):
    """LuminaT2IAdapterBlock.forward + the per-layer adapter_out linear."""
    B, L, dim = hs.shape
    kv_dim = kv_heads * head_dim
    q, k, v = qkv_project(hs, cos_t, sina_t, sinb_t, lp, dim, kv_dim, head_dim,
                          eps, head_dim ** -0.5)
    h = attention_residual(hs, q, k, v, heads, head_dim)   # hs + attn, f32
    hs_new2d, feat2d = ffn_adapter(h.reshape(B * L, dim), lp, eps)
    return hs_new2d.reshape(B, L, dim), feat2d.reshape(B, L, dim)


def lumina_t2i_adapter_forward(params, cfg, condition_img, image_rotary_emb):
    """LuminaT2IAdapter.forward.

    condition_img: (B, 3, H, W) float32 (NCHW, as in PyTorch).
    image_rotary_emb: (H_max_tok, W_max_tok, head_dim//2) complex64 freqs_cis.
    Returns: list of num_layers features, each (B, L, hidden_size).
    """
    patch = cfg["patch_size"]
    dim = cfg["hidden_size"]
    heads = cfg["num_attention_heads"]
    kv_heads = cfg["num_kv_heads"] or heads
    head_dim = dim // heads
    eps = cfg["norm_eps"]
    dh = head_dim // 2

    # ----- condition_img_in (conv stack, stride handled inside im2col) -----
    x = jnp.transpose(condition_img.astype(jnp.float32), (0, 2, 3, 1))  # NCHW->NHWC
    for (w, b, stride, silu) in params["convs"]:
        x = conv3x3(x, w, b, stride, silu)

    # ----- LuminaPatchEmbed -----
    B, h, wdt, C = x.shape
    Ht, Wt = h // patch, wdt // patch
    L = Ht * Wt
    x_nchw = jnp.transpose(x, (0, 3, 1, 2))
    patches = (x_nchw.reshape(B, C, Ht, patch, Wt, patch)
               .transpose(0, 2, 4, 1, 3, 5)
               .reshape(B * L, C * patch * patch)).astype(jnp.bfloat16)
    hs = matmul_bias(patches, params["pe_w"], params["pe_b"]).reshape(B, L, dim)
    # (the patch embedder also returns an all-ones mask -> attention masking is a no-op)

    # ----- RoPE tables in the per-head split layout, shared across batch -----
    freqs = image_rotary_emb[:Ht, :Wt].reshape(L, dh)
    cos = jnp.real(freqs).astype(jnp.float32)
    sin = jnp.imag(freqs).astype(jnp.float32)
    zero = jnp.zeros_like(sin)
    cos_t = jnp.tile(jnp.concatenate([cos, cos], -1), (1, heads)).astype(jnp.bfloat16)
    sina_t = jnp.tile(jnp.concatenate([-sin, zero], -1), (1, heads)).astype(jnp.bfloat16)
    sinb_t = jnp.tile(jnp.concatenate([zero, sin], -1), (1, heads)).astype(jnp.bfloat16)

    # ----- transformer adapter blocks -----
    features = []
    for lp in params["layers"]:
        hs, feat = _adapter_block(hs, lp, cos_t, sina_t, sinb_t,
                                  heads, kv_heads, head_dim, eps)
        features.append(feat)
    return features


# --------------------------------------------------------------------------
# Deterministic parameter construction (shapes follow the PyTorch __init__).
# The RoPE interleave->split permutation is folded into wq/wk columns, their
# biases and the qk-LayerNorm params (semantics-preserving: q and k heads get
# the same internal permutation, v is untouched, so attention output is
# identical to the reference ordering).
# --------------------------------------------------------------------------
def _rope_split_perm(n_heads, head_dim):
    dh = head_dim // 2
    per_head = np.concatenate([2 * np.arange(dh), 2 * np.arange(dh) + 1])
    return np.concatenate([h * head_dim + per_head for h in range(n_heads)])


def init_params(key, cfg):
    dim = cfg["hidden_size"]
    rank = cfg["rank"]
    heads = cfg["num_attention_heads"]
    kv_heads = cfg["num_kv_heads"] or heads
    head_dim = dim // heads
    kv_dim = kv_heads * head_dim
    in_ch = cfg["in_channels"]
    patch = cfg["patch_size"]

    inner = int(2 * (4 * dim) / 3)
    if cfg["ffn_dim_multiplier"] is not None:
        inner = int(cfg["ffn_dim_multiplier"] * inner)
    mo = cfg["multiple_of"]
    inner = mo * ((inner + mo - 1) // mo)

    perm_q = _rope_split_perm(heads, head_dim)
    perm_k = _rope_split_perm(kv_heads, head_dim)

    keys = iter(jax.random.split(key, 4096))

    def nrm(shape, scale=0.05):
        return scale * jax.random.normal(next(keys), shape, dtype=jnp.float32)

    def lora_linear(in_f, out_f):
        # LoraLinear: y = x @ (WA @ WB / rank) + b   (effective W precomputed)
        WA = nrm((in_f, rank), 0.2)
        WB = nrm((rank, out_f), 0.2)   # torch zero-inits WB; randomized (see header)
        b = nrm((out_f,), 0.02)
        return (WA @ WB) * (1.0 / rank), b

    conv_specs = [(3, 16, 1, True), (16, 16, 1, True), (16, 16, 2, True),
                  (16, 16, 1, True), (16, 16, 2, True), (16, 16, 1, True),
                  (16, 16, 2, True), (16, in_ch, 1, False)]
    convs = []
    for (cin, cout, stride, silu) in conv_specs:
        w = nrm((3, 3, cin, cout), 0.1).reshape(9 * cin, cout).astype(jnp.bfloat16)
        convs.append((w, nrm((cout,), 0.02), stride, silu))

    layers = []
    for _ in range(cfg["num_layers"]):
        wq, bq = lora_linear(dim, heads * head_dim)
        wk, bk = lora_linear(dim, kv_dim)
        wv, bv = lora_linear(dim, kv_dim)
        # fold the RoPE split permutation into q/k projections + qk-LayerNorm
        wq, bq = wq[:, perm_q], bq[perm_q]
        wk, bk = wk[:, perm_k], bk[perm_k]
        # TODO(synk): attn1.to_out LoRA linear exists in the module but is never
        # used in this block's forward, so it is not materialized here.
        wqkv = jnp.concatenate([wq, wk, wv], axis=1).astype(jnp.bfloat16)
        bqkv = jnp.concatenate([bq, bk, bv], axis=0)
        w1, b1 = lora_linear(dim, inner)
        w3, b3 = lora_linear(dim, inner)
        w2, b2 = lora_linear(inner, dim)
        layers.append(dict(
            norm_w=1.0 + nrm((dim,), 0.02),
            ffn_norm_w=1.0 + nrm((dim,), 0.02),
            wqkv=wqkv, bqkv=bqkv,
            normq_w=(1.0 + nrm((dim,), 0.02))[perm_q],
            normq_b=nrm((dim,), 0.02)[perm_q],
            normk_w=(1.0 + nrm((kv_dim,), 0.02))[perm_k],
            normk_b=nrm((kv_dim,), 0.02)[perm_k],
            w1=w1.astype(jnp.bfloat16), b1=b1,
            w3=w3.astype(jnp.bfloat16), b3=b3,
            w2=w2.astype(jnp.bfloat16), b2=b2,
            adapter_w=nrm((dim, dim), 0.05).astype(jnp.bfloat16),  # torch zero-inits
            adapter_b=nrm((dim,), 0.02),
        ))

    return dict(convs=convs,
                pe_w=nrm((patch * patch * in_ch, dim), 0.1).astype(jnp.bfloat16),
                pe_b=nrm((dim,), 0.02),
                layers=layers)


def build_freqs_cis(h_max, w_max, head_dim, theta=10000.0):
    """Lumina-style 2D RoPE freqs_cis: complex64 (h_max, w_max, head_dim//2)."""
    d4 = head_dim // 4
    inv = 1.0 / (theta ** (np.arange(d4, dtype=np.float32) / d4))
    ang_h = np.outer(np.arange(h_max, dtype=np.float32), inv)
    ang_w = np.outer(np.arange(w_max, dtype=np.float32), inv)
    fh = np.exp(1j * ang_h)[:, None, :] * np.ones((1, w_max, 1))
    fw = np.exp(1j * ang_w)[None, :, :] * np.ones((h_max, 1, 1))
    return jnp.asarray(np.concatenate([fh, fw], axis=-1).astype(np.complex64))


# --------------------------------------------------------------------------
if __name__ == "__main__":
    cfg = dict(sample_size=64, patch_size=2, in_channels=4, hidden_size=64,
               num_layers=2, num_attention_heads=4, num_kv_heads=None,
               multiple_of=32, ffn_dim_multiplier=None, norm_eps=1e-5,
               learn_sigma=True, qk_norm=True, scaling_factor=1.0, rank=4)
    assert (cfg["hidden_size"] // cfg["num_attention_heads"]) % 4 == 0, \
        "2d rope needs head dim divisible by 4"

    key = jax.random.PRNGKey(0)
    pkey, xkey = jax.random.split(key)
    params = init_params(pkey, cfg)

    B, Himg, Wimg = 2, 64, 64
    condition_img = jax.random.normal(xkey, (B, 3, Himg, Wimg), dtype=jnp.float32)

    head_dim = cfg["hidden_size"] // cfg["num_attention_heads"]
    h_tok = Himg // 8 // cfg["patch_size"]   # conv stack downsamples by 8, then patchify
    w_tok = Wimg // 8 // cfg["patch_size"]
    image_rotary_emb = build_freqs_cis(h_tok + 2, w_tok + 2, head_dim)

    features = lumina_t2i_adapter_forward(params, cfg, condition_img, image_rotary_emb)
    features = jax.block_until_ready(features)

    assert len(features) == cfg["num_layers"]
    for f in features:
        assert f.shape == (B, h_tok * w_tok, cfg["hidden_size"]), f.shape
        assert bool(jnp.all(jnp.isfinite(f)))
    print("KERNEL_OK")
</pallas_src>

<mosaic_0001>
module attributes {stable_mosaic.version = 11 : i64} {
  func.func @_matmul_bias_kernel(%arg0: i32, %arg1: memref<512x27xbf16, #tpu.memory_space<vmem>>, %arg2: memref<27x16xbf16, #tpu.memory_space<vmem>>, %arg3: memref<1x16xf32, #tpu.memory_space<vmem>>, %arg4: memref<512x16xbf16, #tpu.memory_space<vmem>>) attributes {dimension_semantics = [#tpu.dimension_semantics<parallel>], iteration_bounds = array<i64: 16>, scalar_prefetch = 0 : i64, scratch_operands = 0 : i64, tpu.core_type = #tpu.core_type<tc>, window_params = [{transform_indices = @transform_0, window_bounds = array<i64: 512, 27>}, {pipeline_mode = #tpu.pipeline_mode<synchronous>, transform_indices = @transform_1, window_bounds = array<i64: 27, 16>}, {pipeline_mode = #tpu.pipeline_mode<synchronous>, transform_indices = @transform_2, window_bounds = array<i64: 1, 16>}, {transform_indices = @transform_3, window_bounds = array<i64: 512, 16>}]} {
    %c0 = arith.constant 0 : index
    %c0_0 = arith.constant 0 : index
    %0 = vector.load %arg1[%c0, %c0_0] : memref<512x27xbf16, #tpu.memory_space<vmem>>, vector<512x27xbf16>
    %c0_1 = arith.constant 0 : index
    %c0_2 = arith.constant 0 : index
    %1 = vector.load %arg2[%c0_1, %c0_2] : memref<27x16xbf16, #tpu.memory_space<vmem>>, vector<27x16xbf16>
    %cst = arith.constant dense<0.000000e+00> : vector<512x16xf32>
    %2 = tpu.matmul %0, %1, %cst {dimension_numbers = #tpu.dot_dimension_numbers<[1], [0], [0], [1], [0, 0, 1, 1], [], []>} : vector<512x27xbf16>, vector<27x16xbf16>, vector<512x16xf32> -> vector<512x16xf32>
    %c0_3 = arith.constant 0 : index
    %c0_4 = arith.constant 0 : index
    %3 = vector.load %arg3[%c0_3, %c0_4] : memref<1x16xf32, #tpu.memory_space<vmem>>, vector<1x16xf32>
    %4 = vector.broadcast %3 : vector<1x16xf32> to vector<512x16xf32>
    %5 = arith.addf %2, %4 : vector<512x16xf32>
    %6 = arith.negf %5 : vector<512x16xf32>
    %7 = math.exp %6 : vector<512x16xf32>
    %cst_5 = arith.constant 1.000000e+00 : f32
    %8 = vector.broadcast %cst_5 : f32 to vector<512x16xf32>
    %9 = arith.addf %8, %7 : vector<512x16xf32>
    %10 = arith.divf %8, %9 : vector<512x16xf32>
    %11 = arith.mulf %5, %10 : vector<512x16xf32>
    %12 = arith.truncf %11 : vector<512x16xf32> to vector<512x16xbf16>
    %c0_6 = arith.constant 0 : index
    %c0_7 = arith.constant 0 : index
    %13 = vector.load %arg4[%c0_6, %c0_7] : memref<512x16xbf16, #tpu.memory_space<vmem>>, vector<512x16xbf16>
    tpu.vector_store %arg4[%c0_6, %c0_7], %12 {strides = array<i32>} : memref<512x16xbf16, #tpu.memory_space<vmem>>, vector<512x16xbf16>,
    return
  }
  func.func @transform_0(%arg0: i32) -> (i32, i32) {
    %c0_i32 = arith.constant 0 : i32
    %c0_i32_0 = arith.constant 0 : i32
    return %arg0, %c0_i32 : i32, i32
  }
  func.func @transform_1(%arg0: i32) -> (i32, i32) {
    %c0_i32 = arith.constant 0 : i32
    %c0_i32_0 = arith.constant 0 : i32
    %c0_i32_1 = arith.constant 0 : i32
    return %c0_i32, %c0_i32_0 : i32, i32
  }
  func.func @transform_2(%arg0: i32) -> (i32, i32) {
    %c0_i32 = arith.constant 0 : i32
    %c0_i32_0 = arith.constant 0 : i32
    %c0_i32_1 = arith.constant 0 : i32
    return %c0_i32, %c0_i32_0 : i32, i32
  }
  func.func @transform_3(%arg0: i32) -> (i32, i32) {
    %c0_i32 = arith.constant 0 : i32
    %c0_i32_0 = arith.constant 0 : i32
    return %arg0, %c0_i32 : i32, i32
  }
}

</mosaic_0001>

<llo_original>
// kernel: tpu_custom_call.1
$region0: #{tpu_custom_call.1}
  #allocation0 [shape = 'u32[]', space=smem, size = 0x4, offset = 0x4, fixed_abs, tag = 'smem constant byte address 0x4 - core index']
  #allocation1 [shape = 'u32[72,128]{1,0:T(1,128)}', space=vmem, size = 0x9000, scoped, tag = 'internal scratch']
  %s0 = inlined_call_operand.vmem [shape: bf16[8192,27], index: 0, kind: input, shape index: {}]
  %s1 = inlined_call_operand.vmem [shape: bf16[27,16], index: 1, kind: input, shape index: {}]
  %s2 = inlined_call_operand.vmem [shape: f32[1,16], index: 2, kind: input, shape index: {}]
  %s3 = inlined_call_operand.vmem [shape: bf16[8192,16], index: 3, kind: output, shape index: {}]
  %s4 = sld [smem:[#allocation0]]
  $region45: #{tpu_custom_call.1} parent=0
    _
  %s6 = ssub.s32 1, %s4
  %s7 = scalar_select 0, %s6, %s4
  loop: start=0, step=1, limit=18
  $region2: #{tpu_custom_call.1} parent=0 // loop_pre_header
    _
  $region3: #{tpu_custom_call.1} parent=0 // loop_header
    %s9 = sphi 0, %s13
    %p10 = scmp.ge.s32.totalorder %s9, 18
    %s19 = sphi 0, %s21
    %s22 = sphi 0, %s19
    %s23 = sphi 0, %s22
    %s39 = sphi 0, %s23
    %s43 = sphi 0, %s43
    %s45 = sphi 0, %s43
    %s46 = sphi 0, %s45
    %s60 = sphi 0, %s46
    %s64 = sphi 0, %s64
    %s66 = sphi 0, %s64
    %s67 = sphi 0, %s66
    %s81 = sphi 0, %s67
    %s87 = sphi 0, %s89
    %s90 = sphi 0, %s87
    %s91 = sphi 0, %s90
    %s107 = sphi 0, %s91
  $region4: #{tpu_custom_call.1} parent=0 // loop_header_branch
    %12 = sbr.rel (%p10) target = $region8
  $region5: #{tpu_custom_call.1} parent=0 // loop_body
    %s14 = ssub.s32 %s9, 1
    %s15 = ssub.s32 %s9, 2
    %s16 = sadd.s32 %s9, 1
    %s17 = ssub.s32 %s9, %s16
    %p18 = scmp.eq.s32.totalorder %s17, 0
    %s20 = sadd.s32 %s19, 1
    %s21 = scalar_select %p18, %s19, %s20
    %p24 = pneg %p18
    %p25 = scmp.eq.s32.totalorder %s9, 15
    %p26 = por %p24, %p25
    %p27 = scmp.ne.s32.totalorder %s19, %s22
    %p28 = scmp.eq.s32.totalorder %s9, 0
    %p29 = por %p27, %p28
    %p30 = scmp.ne.s32.totalorder %s19, %s22
    %p31 = scmp.eq.s32.totalorder %s14, 15
    %p32 = por %p30, %p31
    %p33 = scmp.ne.s32.totalorder %s22, %s23
    %p34 = scmp.eq.s32.totalorder %s14, 0
    %p35 = por %p33, %p34
    %p36 = scmp.ne.s32.totalorder %s22, %s23
    %p37 = scmp.eq.s32.totalorder %s15, 15
    %p38 = por %p36, %p37
    %p40 = scmp.ne.s32.totalorder %s23, %s39
    %p41 = scmp.eq.s32.totalorder %s15, 0
    %p42 = por %p40, %p41
    %s44 = sadd.s32 %s43, 1
    %p47 = scmp.eq.s32.totalorder %s9, 15
    %p48 = scmp.ne.s32.totalorder %s43, %s45
    %p49 = scmp.eq.s32.totalorder %s9, 0
    %p50 = por %p48, %p49
    %p51 = scmp.ne.s32.totalorder %s43, %s45
    %p52 = scmp.eq.s32.totalorder %s14, 15
    %p53 = por %p51, %p52
    %p54 = scmp.ne.s32.totalorder %s45, %s46
    %p55 = scmp.eq.s32.totalorder %s14, 0
    %p56 = por %p54, %p55
    %p57 = scmp.ne.s32.totalorder %s45, %s46
    %p58 = scmp.eq.s32.totalorder %s15, 15
    %p59 = por %p57, %p58
    %p61 = scmp.ne.s32.totalorder %s46, %s60
    %p62 = scmp.eq.s32.totalorder %s15, 0
    %p63 = por %p61, %p62
    %s65 = sadd.s32 %s64, 1
    %p68 = scmp.eq.s32.totalorder %s9, 15
    %p69 = scmp.ne.s32.totalorder %s64, %s66
    %p70 = scmp.eq.s32.totalorder %s9, 0
    %p71 = por %p69, %p70
    %p72 = scmp.ne.s32.totalorder %s64, %s66
    %p73 = scmp.eq.s32.totalorder %s14, 15
    %p74 = por %p72, %p73
    %p75 = scmp.ne.s32.totalorder %s66, %s67
    %p76 = scmp.eq.s32.totalorder %s14, 0
    %p77 = por %p75, %p76
    %p78 = scmp.ne.s32.totalorder %s66, %s67
    %p79 = scmp.eq.s32.totalorder %s15, 15
    %p80 = por %p78, %p79
    %p82 = scmp.ne.s32.totalorder %s67, %s81
    %p83 = scmp.eq.s32.totalorder %s15, 0
    %p84 = por %p82, %p83
    %s85 = ssub.s32 %s9, %s16
    %p86 = scmp.eq.s32.totalorder %s85, 0
    %s88 = sadd.s32 %s87, 1
    %s89 = scalar_select %p86, %s87, %s88
    %p92 = pneg %p86
    %p93 = scmp.eq.s32.totalorder %s9, 15
    %p94 = por %p92, %p93
    %p95 = scmp.ne.s32.totalorder %s87, %s90
    %p96 = scmp.eq.s32.totalorder %s9, 0
    %p97 = por %p95, %p96
    %p98 = scmp.ne.s32.totalorder %s87, %s90
    %p99 = scmp.eq.s32.totalorder %s14, 15
    %p100 = por %p98, %p99
    %p101 = scmp.ne.s32.totalorder %s90, %s91
    %p102 = scmp.eq.s32.totalorder %s14, 0
    %p103 = por %p101, %p102
    %p104 = scmp.ne.s32.totalorder %s90, %s91
    %p105 = scmp.eq.s32.totalorder %s15, 15
    %p106 = por %p104, %p105
    %p108 = scmp.ne.s32.totalorder %s91, %s107
    %p109 = scmp.eq.s32.totalorder %s15, 0
    %p110 = por %p108, %p109
    %p111 = scmp.le.s32.totalorder 1, %s9
    %p112 = scmp.lt.s32.totalorder %s9, 17
    %p113 = pnand %p111, %p112
    %p114 = pneg %p113
    // Predicated region
    $region9: #{tpu_custom_call.1} parent=5 // pred_check
      _
    $region10: #{tpu_custom_call.1} parent=5 // pred_check_branch
      %116 = sbr.rel (%p113) target = $region12
    $region11: #{tpu_custom_call.1} parent=5 // pred_region
      %s117 = ssub.s32 %s9, 1
      // Predicated region
      $region13: #{tpu_custom_call.1} parent=11 // pred_check
        %p118 = pneg %p56
      $region14: #{tpu_custom_call.1} parent=11 // pred_check_branch
        %120 = sbr.rel (%p118) target = $region16
      $region15: #{tpu_custom_call.1} parent=11 // pred_region
        _
      $region16: #{tpu_custom_call.1} parent=11 // pred_fallthru
        _
      // Predicated region
      $region17: #{tpu_custom_call.1} parent=11 // pred_check
        %p121 = pneg %p77
      $region18: #{tpu_custom_call.1} parent=11 // pred_check_branch
        %123 = sbr.rel (%p121) target = $region20
      $region19: #{tpu_custom_call.1} parent=11 // pred_region
        _
      $region20: #{tpu_custom_call.1} parent=11 // pred_fallthru
        _
    $region12: #{tpu_custom_call.1} parent=5 // pred_fallthru
      _
    %p124 = scmp.lt.s32.totalorder %s9, 16
    // Predicated region
    $region21: #{tpu_custom_call.1} parent=5 // pred_check
      %p125 = pneg %p124
    $region22: #{tpu_custom_call.1} parent=5 // pred_check_branch
      %127 = sbr.rel (%p125) target = $region24
    $region23: #{tpu_custom_call.1} parent=5 // pred_region
      // Predicated region
      $region25: #{tpu_custom_call.1} parent=23 // pred_check
        %p128 = pneg %p29
      $region26: #{tpu_custom_call.1} parent=23 // pred_check_branch
        %130 = sbr.rel (%p128) target = $region28
      $region27: #{tpu_custom_call.1} parent=23 // pred_region
        %s131 = smul.u32 64, %s9
        %p132 = scmp.lt.s32.totalorder %s131, 1023
        %s133 = scalar_select %p132, %s131, 1023
        %s134 = smul.addr %s133, 4
        %s135 = scalar_lea.vmem %s0, %s134
        %s136 = smul.u32 64, %s9
      $region28: #{tpu_custom_call.1} parent=23 // pred_fallthru
        _
    $region24: #{tpu_custom_call.1} parent=5 // pred_fallthru
      _
    %p137 = scmp.le.s32.totalorder 1, %s9
    %p138 = scmp.lt.s32.totalorder %s9, 17
    %p139 = pnand %p137, %p138
    %p140 = pneg %p139
    // Predicated region
    $region29: #{tpu_custom_call.1} parent=5 // pred_check
      _
    $region30: #{tpu_custom_call.1} parent=5 // pred_check_branch
      %142 = sbr.rel (%p139) target = $region32
    $region31: #{tpu_custom_call.1} parent=5 // pred_region
      %s143 = ssub.s32 %s9, 1
      %s144 = smul.u32 64, %s14
      %p145 = scmp.lt.s32.totalorder %s144, 1023
      %s146 = scalar_select %p145, %s144, 1023
      %s147 = smul.addr %s146, 4
      %s148 = scalar_lea.vmem %s0, %s147
      %p149 = pneg %p35
      %p150 = pneg %p32
      %p151 = pneg %p56
      %p152 = pneg %p53
      %p153 = pneg %p77
      %p154 = pneg %p74
      %p155 = pneg %p103
      %p156 = pneg %p100
      %s157 = smul.u32 64, %s14
      %p158 = scmp.lt.s32.totalorder %s157, 1023
      %s159 = scalar_select %p158, %s157, 1023
      %s160 = smul.addr %s159, 4
      %s161 = scalar_lea.vmem %s3, %s160
      %s162 = smul.u32 64, %s14
      %p163 = scmp.lt.s32.totalorder %s162, 1023
      %s164 = scalar_select %p163, %s162, 1023
      %s165 = smul.addr %s164, 4
      %s166 = scalar_lea.vmem %s0, %s165
      %s167 = smul.u32 64, %s14
      %s168 = smul.u32 64, %s14
      %p169 = scmp.lt.s32.totalorder %s168, 1023
      %s170 = scalar_select %p169, %s168, 1023
      %s171 = smul.addr %s170, 4
      %s172 = scalar_lea.vmem %s3, %s171
      %s173 = smul.u32 64, %s14
      %v175 = vld [vmem:[%s166] sm:$0xf]
      %v176 = vld [vmem:[%s166 + $0x4] sm:$0xf]
      %v177 = vld [vmem:[%s166 + $0x8] sm:$0xf]
      %v178 = vld [vmem:[%s166 + $0xc] sm:$0xf]
      %v179 = vld [vmem:[%s166 + $0x10] sm:$0xf]
      %v180 = vld [vmem:[%s166 + $0x14] sm:$0xf]
      %v181 = vld [vmem:[%s166 + $0x18] sm:$0xf]
      %v182 = vld [vmem:[%s166 + $0x1c] sm:$0xf]
      %v183 = vld [vmem:[%s166 + $0x20] sm:$0xf]
      %v184 = vld [vmem:[%s166 + $0x24] sm:$0xf]
      %v185 = vld [vmem:[%s166 + $0x28] sm:$0xf]
      %v186 = vld [vmem:[%s166 + $0x2c] sm:$0xf]
      %v187 = vld [vmem:[%s166 + $0x30] sm:$0xf]
      %v188 = vld [vmem:[%s166 + $0x34] sm:$0xf]
      %v189 = vld [vmem:[%s166 + $0x38] sm:$0xf]
      %v190 = vld [vmem:[%s166 + $0x3c] sm:$0xf]
      %v191 = vld [vmem:[%s166 + $0x40] sm:$0xf]
      %v192 = vld [vmem:[%s166 + $0x44] sm:$0xf]
      %v193 = vld [vmem:[%s166 + $0x48] sm:$0xf]
      %v194 = vld [vmem:[%s166 + $0x4c] sm:$0xf]
      %v195 = vld [vmem:[%s166 + $0x50] sm:$0xf]
      %v196 = vld [vmem:[%s166 + $0x54] sm:$0xf]
      %v197 = vld [vmem:[%s166 + $0x58] sm:$0xf]
      %v198 = vld [vmem:[%s166 + $0x5c] sm:$0xf]
      %v199 = vld [vmem:[%s166 + $0x60] sm:$0xf]
      %v200 = vld [vmem:[%s166 + $0x64] sm:$0xf]
      %v201 = vld [vmem:[%s166 + $0x68] sm:$0xf]
      %v202 = vld [vmem:[%s166 + $0x6c] sm:$0xf]
      %v203 = vld [vmem:[%s166 + $0x70] sm:$0xf]
      %v204 = vld [vmem:[%s166 + $0x74] sm:$0xf]
      %v205 = vld [vmem:[%s166 + $0x78] sm:$0xf]
      %v206 = vld [vmem:[%s166 + $0x7c] sm:$0xf]
      %v207 = vld [vmem:[%s166 + $0x80] sm:$0xf]
      %v208 = vld [vmem:[%s166 + $0x84] sm:$0xf]
      %v209 = vld [vmem:[%s166 + $0x88] sm:$0xf]
      %v210 = vld [vmem:[%s166 + $0x8c] sm:$0xf]
      %v211 = vld [vmem:[%s166 + $0x90] sm:$0xf]
      %v212 = vld [vmem:[%s166 + $0x94] sm:$0xf]
      %v213 = vld [vmem:[%s166 + $0x98] sm:$0xf]
      %v214 = vld [vmem:[%s166 + $0x9c] sm:$0xf]
      %v215 = vld [vmem:[%s166 + $0xa0] sm:$0xf]
      %v216 = vld [vmem:[%s166 + $0xa4] sm:$0xf]
      %v217 = vld [vmem:[%s166 + $0xa8] sm:$0xf]
      %v218 = vld [vmem:[%s166 + $0xac] sm:$0xf]
      %v219 = vld [vmem:[%s166 + $0xb0] sm:$0xf]
      %v220 = vld [vmem:[%s166 + $0xb4] sm:$0xf]
      %v221 = vld [vmem:[%s166 + $0xb8] sm:$0xf]
      %v222 = vld [vmem:[%s166 + $0xbc] sm:$0xf]
      %v223 = vld [vmem:[%s166 + $0xc0] sm:$0xf]
      %v224 = vld [vmem:[%s166 + $0xc4] sm:$0xf]
      %v225 = vld [vmem:[%s166 + $0xc8] sm:$0xf]
      %v226 = vld [vmem:[%s166 + $0xcc] sm:$0xf]
      %v227 = vld [vmem:[%s166 + $0xd0] sm:$0xf]
      %v228 = vld [vmem:[%s166 + $0xd4] sm:$0xf]
      %v229 = vld [vmem:[%s166 + $0xd8] sm:$0xf]
      %v230 = vld [vmem:[%s166 + $0xdc] sm:$0xf]
      %v231 = vld [vmem:[%s166 + $0xe0] sm:$0xf]
      %v232 = vld [vmem:[%s166 + $0xe4] sm:$0xf]
      %v233 = vld [vmem:[%s166 + $0xe8] sm:$0xf]
      %v234 = vld [vmem:[%s166 + $0xec] sm:$0xf]
      %v235 = vld [vmem:[%s166 + $0xf0] sm:$0xf]
      %v236 = vld [vmem:[%s166 + $0xf4] sm:$0xf]
      %v237 = vld [vmem:[%s166 + $0xf8] sm:$0xf]
      %v238 = vld [vmem:[%s166 + $0xfc] sm:$0xf]
      %v239 = vld [vmem:[%s1] sm:$0xf]
      %v240 = vld [vmem:[%s1 + $0x4] sm:$0xf]
      %v241 = vld [vmem:[%s1 + $0x8] sm:$0xf]
      %v242 = vld [vmem:[%s1 + $0xc] sm:$0x3]
      %v243 = vld [vmem:[%s2] sm:$0x1]
      %v245 = vperm.slane %v243, 0
      %v311 = vunpack.c.l.b16 %v175
      %v312 = vunpack.c.l.b16 %v176
      %v313 = vunpack.c.l.b16 %v177
      %v314 = vunpack.c.l.b16 %v178
      %v315 = vunpack.c.l.b16 %v179
      %v316 = vunpack.c.l.b16 %v180
      %v317 = vunpack.c.l.b16 %v181
      %v318 = vunpack.c.l.b16 %v182
      %v319 = vunpack.c.l.b16 %v183
      %v320 = vunpack.c.l.b16 %v184
      %v321 = vunpack.c.l.b16 %v185
      %v322 = vunpack.c.l.b16 %v186
      %v323 = vunpack.c.l.b16 %v187
      %v324 = vunpack.c.l.b16 %v188
      %v325 = vunpack.c.l.b16 %v189
      %v326 = vunpack.c.l.b16 %v190
      %v327 = vunpack.c.l.b16 %v191
      %v328 = vunpack.c.l.b16 %v192
      %v329 = vunpack.c.l.b16 %v193
      %v330 = vunpack.c.l.b16 %v194
      %v331 = vunpack.c.l.b16 %v195
      %v332 = vunpack.c.l.b16 %v196
      %v333 = vunpack.c.l.b16 %v197
      %v334 = vunpack.c.l.b16 %v198
      %v335 = vunpack.c.l.b16 %v199
      %v336 = vunpack.c.l.b16 %v200
      %v337 = vunpack.c.l.b16 %v201
      %v338 = vunpack.c.l.b16 %v202
      %v339 = vunpack.c.l.b16 %v203
      %v340 = vunpack.c.l.b16 %v204
      %v341 = vunpack.c.l.b16 %v205
      %v342 = vunpack.c.l.b16 %v206
      %v343 = vunpack.c.l.b16 %v207
      %v344 = vunpack.c.l.b16 %v208
      %v345 = vunpack.c.l.b16 %v209
      %v346 = vunpack.c.l.b16 %v210
      %v347 = vunpack.c.l.b16 %v211
      %v348 = vunpack.c.l.b16 %v212
      %v349 = vunpack.c.l.b16 %v213
      %v350 = vunpack.c.l.b16 %v214
      %v351 = vunpack.c.l.b16 %v215
      %v352 = vunpack.c.l.b16 %v216
      %v353 = vunpack.c.l.b16 %v217
      %v354 = vunpack.c.l.b16 %v218
      %v355 = vunpack.c.l.b16 %v219
      %v356 = vunpack.c.l.b16 %v220
      %v357 = vunpack.c.l.b16 %v221
      %v358 = vunpack.c.l.b16 %v222
      %v359 = vunpack.c.l.b16 %v223
      %v360 = vunpack.c.l.b16 %v224
      %v361 = vunpack.c.l.b16 %v225
      %v362 = vunpack.c.l.b16 %v226
      %v363 = vunpack.c.l.b16 %v227
      %v364 = vunpack.c.l.b16 %v228
      %v365 = vunpack.c.l.b16 %v229
      %v366 = vunpack.c.l.b16 %v230
      %v367 = vunpack.c.l.b16 %v231
      %v368 = vunpack.c.l.b16 %v232
      %v369 = vunpack.c.l.b16 %v233
      %v370 = vunpack.c.l.b16 %v234
      %v371 = vunpack.c.l.b16 %v235
      %v372 = vunpack.c.l.b16 %v236
      %v373 = vunpack.c.l.b16 %v237
      %v374 = vunpack.c.l.b16 %v238
      %v375 = vpack.c.b16 %v312, %v311
      %v376 = vpack.c.b16 %v314, %v313
      %v377 = vpack.c.b16 %v316, %v315
      %v378 = vpack.c.b16 %v318, %v317
      %v379 = vpack.c.b16 %v320, %v319
      %v380 = vpack.c.b16 %v322, %v321
      %v381 = vpack.c.b16 %v324, %v323
      %v382 = vpack.c.b16 %v326, %v325
      %v383 = vpack.c.b16 %v328, %v327
      %v384 = vpack.c.b16 %v330, %v329
      %v385 = vpack.c.b16 %v332, %v331
      %v386 = vpack.c.b16 %v334, %v333
      %v387 = vpack.c.b16 %v336, %v335
      %v388 = vpack.c.b16 %v338, %v337
      %v389 = vpack.c.b16 %v340, %v339
      %v390 = vpack.c.b16 %v342, %v341
      %v391 = vpack.c.b16 %v344, %v343
      %v392 = vpack.c.b16 %v346, %v345
      %v393 = vpack.c.b16 %v348, %v347
      %v394 = vpack.c.b16 %v350, %v349
      %v395 = vpack.c.b16 %v352, %v351
      %v396 = vpack.c.b16 %v354, %v353
      %v397 = vpack.c.b16 %v356, %v355
      %v398 = vpack.c.b16 %v358, %v357
      %v399 = vpack.c.b16 %v360, %v359
      %v400 = vpack.c.b16 %v362, %v361
      %v401 = vpack.c.b16 %v364, %v363
      %v402 = vpack.c.b16 %v366, %v365
      %v403 = vpack.c.b16 %v368, %v367
      %v404 = vpack.c.b16 %v370, %v369
      %v405 = vpack.c.b16 %v372, %v371
      %v406 = vpack.c.b16 %v374, %v373
      %v411 = vunpack.c.l.b16 %v239
      %v412 = vunpack.c.l.b16 %v240
      %v413 = vunpack.c.l.b16 %v241
      %v414 = vunpack.c.l.b16 %v242
      %v415 = vpack.c.b16 %v412, %v411
      %v416 = vpack.c.b16 %v414, %v413
      %vm418 = vcmask 220160
      %v420 = vsel %vm418, %v375, 0
      %v423 = vsel %vm418, %v376, 0
      %v426 = vsel %vm418, %v377, 0
      %v429 = vsel %vm418, %v378, 0
      %v432 = vsel %vm418, %v379, 0
      %v435 = vsel %vm418, %v380, 0
      %v438 = vsel %vm418, %v381, 0
      %v441 = vsel %vm418, %v382, 0
      %v444 = vsel %vm418, %v383, 0
      %v447 = vsel %vm418, %v384, 0
      %v450 = vsel %vm418, %v385, 0
      %v453 = vsel %vm418, %v386, 0
      %v456 = vsel %vm418, %v387, 0
      %v459 = vsel %vm418, %v388, 0
      %v462 = vsel %vm418, %v389, 0
      %v465 = vsel %vm418, %v390, 0
      %v468 = vsel %vm418, %v391, 0
      %v471 = vsel %vm418, %v392, 0
      %v474 = vsel %vm418, %v393, 0
      %v477 = vsel %vm418, %v394, 0
      %v480 = vsel %vm418, %v395, 0
      %v483 = vsel %vm418, %v396, 0
      %v486 = vsel %vm418, %v397, 0
      %v489 = vsel %vm418, %v398, 0
      %v492 = vsel %vm418, %v399, 0
      %v495 = vsel %vm418, %v400, 0
      %v498 = vsel %vm418, %v401, 0
      %v501 = vsel %vm418, %v402, 0
      %v504 = vsel %vm418, %v403, 0
      %v507 = vsel %vm418, %v404, 0
      %v510 = vsel %vm418, %v405, 0
      %v513 = vsel %vm418, %v406, 0
      %vm515 = vcmask 1044480
      %vm516 = vcmask 1045504
      %v517 = vsel %vm515, 4294967295, 65535
      %v518 = vsel %vm516, %v517, 0
      %v520 = vand.u32 %v416, %v518
      %522 = vmatpush.bf16.msra.mxu0 0
      %523 = vmatpush.bf16.msra.mxu0 0
      %524 = vmatpush.bf16.msra.mxu0 0
      %525 = vmatpush.bf16.msra.mxu0 0
      %526 = vmatpush.bf16.msra.mxu0 0
      %527 = vmatpush.bf16.msra.mxu0 0
      %528 = vmatpush.bf16.msra.mxu0 %v520
      %529 = vmatpush.bf16.msra.mxu0 %v415
      %530 = vmatmul.bf16.gmra.mxu0 %v420
      %v531 = vpop.f32.mrf.mxu0
      %v532 = vadd.f32 %v245, %v531
      %v533 = vpop.f32.mrf.mxu0
      %v534 = vadd.f32 %v245, %v533
      %535 = vmatmul.bf16.gmra.mxu0 %v423
      %v536 = vpop.f32.mrf.mxu0
      %v537 = vadd.f32 %v245, %v536
      %v538 = vpop.f32.mrf.mxu0
      %v539 = vadd.f32 %v245, %v538
      %540 = vmatmul.bf16.gmra.mxu0 %v426
      %v541 = vpop.f32.mrf.mxu0
      %v542 = vadd.f32 %v245, %v541
      %v543 = vpop.f32.mrf.mxu0
      %v544 = vadd.f32 %v245, %v543
      %545 = vmatmul.bf16.gmra.mxu0 %v429
      %v546 = vpop.f32.mrf.mxu0
      %v547 = vadd.f32 %v245, %v546
      %v548 = vpop.f32.mrf.mxu0
      %v549 = vadd.f32 %v245, %v548
      %550 = vmatmul.bf16.gmra.mxu0 %v432
      %v551 = vpop.f32.mrf.mxu0
      %v552 = vadd.f32 %v245, %v551
      %v553 = vpop.f32.mrf.mxu0
      %v554 = vadd.f32 %v245, %v553
      %555 = vmatmul.bf16.gmra.mxu0 %v435
      %v556 = vpop.f32.mrf.mxu0
      %v557 = vadd.f32 %v245, %v556
      %v558 = vpop.f32.mrf.mxu0
      %v559 = vadd.f32 %v245, %v558
      %560 = vmatmul.bf16.gmra.mxu0 %v438
      %v561 = vpop.f32.mrf.mxu0
      %v562 = vadd.f32 %v245, %v561
      %v563 = vpop.f32.mrf.mxu0
      %v564 = vadd.f32 %v245, %v563
      %565 = vmatmul.bf16.gmra.mxu0 %v441
      %v566 = vpop.f32.mrf.mxu0
      %v567 = vadd.f32 %v245, %v566
      %v568 = vpop.f32.mrf.mxu0
      %v569 = vadd.f32 %v245, %v568
      %570 = vmatmul.bf16.gmra.mxu0 %v444
      %v571 = vpop.f32.mrf.mxu0
      %v572 = vadd.f32 %v245, %v571
      %v573 = vpop.f32.mrf.mxu0
      %v574 = vadd.f32 %v245, %v573
      %575 = vmatmul.bf16.gmra.mxu0 %v447
      %v576 = vpop.f32.mrf.mxu0
      %v577 = vadd.f32 %v245, %v576
      %v578 = vpop.f32.mrf.mxu0
      %v579 = vadd.f32 %v245, %v578
      %580 = vmatmul.bf16.gmra.mxu0 %v450
      %v581 = vpop.f32.mrf.mxu0
      %v582 = vadd.f32 %v245, %v581
      %v583 = vpop.f32.mrf.mxu0
      %v584 = vadd.f32 %v245, %v583
      %585 = vmatmul.bf16.gmra.mxu0 %v453
      %v586 = vpop.f32.mrf.mxu0
      %v587 = vadd.f32 %v245, %v586
      %v588 = vpop.f32.mrf.mxu0
      %v589 = vadd.f32 %v245, %v588
      %590 = vmatmul.bf16.gmra.mxu0 %v456
      %v591 = vpop.f32.mrf.mxu0
      %v592 = vadd.f32 %v245, %v591
      %v593 = vpop.f32.mrf.mxu0
      %v594 = vadd.f32 %v245, %v593
      %595 = vmatmul.bf16.gmra.mxu0 %v459
      %v596 = vpop.f32.mrf.mxu0
      %v597 = vadd.f32 %v245, %v596
      %v598 = vpop.f32.mrf.mxu0
      %v599 = vadd.f32 %v245, %v598
      %600 = vmatmul.bf16.gmra.mxu0 %v462
      %v601 = vpop.f32.mrf.mxu0
      %v602 = vadd.f32 %v245, %v601
      %v603 = vpop.f32.mrf.mxu0
      %v604 = vadd.f32 %v245, %v603
      %605 = vmatmul.bf16.gmra.mxu0 %v465
      %v606 = vpop.f32.mrf.mxu0
      %v607 = vadd.f32 %v245, %v606
      %v608 = vpop.f32.mrf.mxu0
      %v609 = vadd.f32 %v245, %v608
      %610 = vmatmul.bf16.gmra.mxu0 %v468
      %v611 = vpop.f32.mrf.mxu0
      %v612 = vadd.f32 %v245, %v611
      %v613 = vpop.f32.mrf.mxu0
      %v614 = vadd.f32 %v245, %v613
      %615 = vmatmul.bf16.gmra.mxu0 %v471
      %v616 = vpop.f32.mrf.mxu0
      %v617 = vadd.f32 %v245, %v616
      %v618 = vpop.f32.mrf.mxu0
      %v619 = vadd.f32 %v245, %v618
      %620 = vmatmul.bf16.gmra.mxu0 %v474
      %v621 = vpop.f32.mrf.mxu0
      %v622 = vadd.f32 %v245, %v621
      %v623 = vpop.f32.mrf.mxu0
      %v624 = vadd.f32 %v245, %v623
      %625 = vmatmul.bf16.gmra.mxu0 %v477
      %v626 = vpop.f32.mrf.mxu0
      %v627 = vadd.f32 %v245, %v626
      %v628 = vpop.f32.mrf.mxu0
      %v629 = vadd.f32 %v245, %v628
      %630 = vmatmul.bf16.gmra.mxu0 %v480
      %v631 = vpop.f32.mrf.mxu0
      %v632 = vadd.f32 %v245, %v631
      %v633 = vpop.f32.mrf.mxu0
      %v634 = vadd.f32 %v245, %v633
      %635 = vmatmul.bf16.gmra.mxu0 %v483
      %v636 = vpop.f32.mrf.mxu0
      %v637 = vadd.f32 %v245, %v636
      %v638 = vpop.f32.mrf.mxu0
      %v639 = vadd.f32 %v245, %v638
      %640 = vmatmul.bf16.gmra.mxu0 %v486
      %v641 = vpop.f32.mrf.mxu0
      %v642 = vadd.f32 %v245, %v641
      %v643 = vpop.f32.mrf.mxu0
      %v644 = vadd.f32 %v245, %v643
      %645 = vmatmul.bf16.gmra.mxu0 %v489
      %v646 = vpop.f32.mrf.mxu0
      %v647 = vadd.f32 %v245, %v646
      %v648 = vpop.f32.mrf.mxu0
      %v649 = vadd.f32 %v245, %v648
      %650 = vmatmul.bf16.gmra.mxu0 %v492
      %v651 = vpop.f32.mrf.mxu0
      %v652 = vadd.f32 %v245, %v651
      %v653 = vpop.f32.mrf.mxu0
      %v654 = vadd.f32 %v245, %v653
      %655 = vmatmul.bf16.gmra.mxu0 %v495
      %v656 = vpop.f32.mrf.mxu0
      %v657 = vadd.f32 %v245, %v656
      %v658 = vpop.f32.mrf.mxu0
      %v659 = vadd.f32 %v245, %v658
      %660 = vmatmul.bf16.gmra.mxu0 %v498
      %v661 = vpop.f32.mrf.mxu0
      %v662 = vadd.f32 %v245, %v661
      %v663 = vpop.f32.mrf.mxu0
      %v664 = vadd.f32 %v245, %v663
      %665 = vmatmul.bf16.gmra.mxu0 %v501
      %v666 = vpop.f32.mrf.mxu0
      %v667 = vadd.f32 %v245, %v666
      %v668 = vpop.f32.mrf.mxu0
      %v669 = vadd.f32 %v245, %v668
      %670 = vmatmul.bf16.gmra.mxu0 %v504
      %v671 = vpop.f32.mrf.mxu0
      %v672 = vadd.f32 %v245, %v671
      %v673 = vpop.f32.mrf.mxu0
      %v674 = vadd.f32 %v245, %v673
      %675 = vmatmul.bf16.gmra.mxu0 %v507
      %v676 = vpop.f32.mrf.mxu0
      %v677 = vadd.f32 %v245, %v676
      %v678 = vpop.f32.mrf.mxu0
      %v679 = vadd.f32 %v245, %v678
      %680 = vmatmul.bf16.gmra.mxu0 %v510
      %v681 = vpop.f32.mrf.mxu0
      %v682 = vadd.f32 %v245, %v681
      %v683 = vpop.f32.mrf.mxu0
      %v684 = vadd.f32 %v245, %v683
      %685 = vmatmul.bf16.gmra.mxu0 %v513
      %v686 = vpop.f32.mrf.mxu0
      %v687 = vadd.f32 %v245, %v686
      %v688 = vpop.f32.mrf.mxu0
      %v689 = vadd.f32 %v245, %v688
      %690 = vdwg.mxu0
      %v691 = vxor.u32 %v532, 2147483648
      %v692 = vxor.u32 %v534, 2147483648
      %v693 = vxor.u32 %v537, 2147483648
      %v694 = vxor.u32 %v539, 2147483648
      %v695 = vxor.u32 %v542, 2147483648
      %v696 = vxor.u32 %v544, 2147483648
      %v697 = vxor.u32 %v547, 2147483648
      %v698 = vxor.u32 %v549, 2147483648
      %v699 = vxor.u32 %v552, 2147483648
      %v700 = vxor.u32 %v554, 2147483648
      %v701 = vxor.u32 %v557, 2147483648
      %v702 = vxor.u32 %v559, 2147483648
      %v703 = vxor.u32 %v562, 2147483648
      %v704 = vxor.u32 %v564, 2147483648
      %v705 = vxor.u32 %v567, 2147483648
      %v706 = vxor.u32 %v569, 2147483648
      %v707 = vxor.u32 %v572, 2147483648
      %v708 = vxor.u32 %v574, 2147483648
      %v709 = vxor.u32 %v577, 2147483648
      %v710 = vxor.u32 %v579, 2147483648
      %v711 = vxor.u32 %v582, 2147483648
      %v712 = vxor.u32 %v584, 2147483648
      %v713 = vxor.u32 %v587, 2147483648
      %v714 = vxor.u32 %v589, 2147483648
      %v715 = vxor.u32 %v592, 2147483648
      %v716 = vxor.u32 %v594, 2147483648
      %v717 = vxor.u32 %v597, 2147483648
      %v718 = vxor.u32 %v599, 2147483648
      %v719 = vxor.u32 %v602, 2147483648
      %v720 = vxor.u32 %v604, 2147483648
      %v721 = vxor.u32 %v607, 2147483648
      %v722 = vxor.u32 %v609, 2147483648
      %v723 = vxor.u32 %v612, 2147483648
      %v724 = vxor.u32 %v614, 2147483648
      %v725 = vxor.u32 %v617, 2147483648
      %v726 = vxor.u32 %v619, 2147483648
      %v727 = vxor.u32 %v622, 2147483648
      %v728 = vxor.u32 %v624, 2147483648
      %v729 = vxor.u32 %v627, 2147483648
      %v730 = vxor.u32 %v629, 2147483648
      %v731 = vxor.u32 %v632, 2147483648
      %v732 = vxor.u32 %v634, 2147483648
      %v733 = vxor.u32 %v637, 2147483648
      %v734 = vxor.u32 %v639, 2147483648
      %v735 = vxor.u32 %v642, 2147483648
      %v736 = vxor.u32 %v644, 2147483648
      %v737 = vxor.u32 %v647, 2147483648
      %v738 = vxor.u32 %v649, 2147483648
      %v739 = vxor.u32 %v652, 2147483648
      %v740 = vxor.u32 %v654, 2147483648
      %v741 = vxor.u32 %v657, 2147483648
      %v742 = vxor.u32 %v659, 2147483648
      %v743 = vxor.u32 %v662, 2147483648
      %v744 = vxor.u32 %v664, 2147483648
      %v745 = vxor.u32 %v667, 2147483648
      %v746 = vxor.u32 %v669, 2147483648
      %v747 = vxor.u32 %v672, 2147483648
      %v748 = vxor.u32 %v674, 2147483648
      %v749 = vxor.u32 %v677, 2147483648
      %v750 = vxor.u32 %v679, 2147483648
      %v751 = vxor.u32 %v682, 2147483648
      %v752 = vxor.u32 %v684, 2147483648
      %v753 = vxor.u32 %v687, 2147483648
      %v754 = vxor.u32 %v689, 2147483648
      %v755 = vmul.f32 %v691, 1.442695
      %v756 = vpow.pop %v755
      %v757 = vmul.f32 %v692, 1.442695
      %v758 = vpow.pop %v757
      %v759 = vmul.f32 %v693, 1.442695
      %v760 = vpow.pop %v759
      %v761 = vmul.f32 %v694, 1.442695
      %v762 = vpow.pop %v761
      %v763 = vmul.f32 %v695, 1.442695
      %v764 = vpow.pop %v763
      %v765 = vmul.f32 %v696, 1.442695
      %v766 = vpow.pop %v765
      %v767 = vmul.f32 %v697, 1.442695
      %v768 = vpow.pop %v767
      %v769 = vmul.f32 %v698, 1.442695
      %v770 = vpow.pop %v769
      %v771 = vmul.f32 %v699, 1.442695
      %v772 = vpow.pop %v771
      %v773 = vmul.f32 %v700, 1.442695
      %v774 = vpow.pop %v773
      %v775 = vmul.f32 %v701, 1.442695
      %v776 = vpow.pop %v775
      %v777 = vmul.f32 %v702, 1.442695
      %v778 = vpow.pop %v777
      %v779 = vmul.f32 %v703, 1.442695
      %v780 = vpow.pop %v779
      %v781 = vmul.f32 %v704, 1.442695
      %v782 = vpow.pop %v781
      %v783 = vmul.f32 %v705, 1.442695
      %v784 = vpow.pop %v783
      %v785 = vmul.f32 %v706, 1.442695
      %v786 = vpow.pop %v785
      %v787 = vmul.f32 %v707, 1.442695
      %v788 = vpow.pop %v787
      %v789 = vmul.f32 %v708, 1.442695
      %v790 = vpow.pop %v789
      %v791 = vmul.f32 %v709, 1.442695
      %v792 = vpow.pop %v791
      %v793 = vmul.f32 %v710, 1.442695
      %v794 = vpow.pop %v793
      %v795 = vmul.f32 %v711, 1.442695
      %v796 = vpow.pop %v795
      %v797 = vmul.f32 %v712, 1.442695
      %v798 = vpow.pop %v797
      %v799 = vmul.f32 %v713, 1.442695
      %v800 = vpow.pop %v799
      %v801 = vmul.f32 %v714, 1.442695
      %v802 = vpow.pop %v801
      %v803 = vmul.f32 %v715, 1.442695
      %v804 = vpow.pop %v803
      %v805 = vmul.f32 %v716, 1.442695
      %v806 = vpow.pop %v805
      %v807 = vmul.f32 %v717, 1.442695
      %v808 = vpow.pop %v807
      %v809 = vmul.f32 %v718, 1.442695
      %v810 = vpow.pop %v809
      %v811 = vmul.f32 %v719, 1.442695
      %v812 = vpow.pop %v811
      %v813 = vmul.f32 %v720, 1.442695
      %v814 = vpow.pop %v813
      %v815 = vmul.f32 %v721, 1.442695
      %v816 = vpow.pop %v815
      %v817 = vmul.f32 %v722, 1.442695
      %v818 = vpow.pop %v817
      %v819 = vmul.f32 %v723, 1.442695
      %v820 = vpow.pop %v819
      %v821 = vmul.f32 %v724, 1.442695
      %v822 = vpow.pop %v821
      %v823 = vmul.f32 %v725, 1.442695
      %v824 = vpow.pop %v823
      %v825 = vmul.f32 %v726, 1.442695
      %v826 = vpow.pop %v825
      %v827 = vmul.f32 %v727, 1.442695
      %v828 = vpow.pop %v827
      %v829 = vmul.f32 %v728, 1.442695
      %v830 = vpow.pop %v829
      %v831 = vmul.f32 %v729, 1.442695
      %v832 = vpow.pop %v831
      %v833 = vmul.f32 %v730, 1.442695
      %v834 = vpow.pop %v833
      %v835 = vmul.f32 %v731, 1.442695
      %v836 = vpow.pop %v835
      %v837 = vmul.f32 %v732, 1.442695
      %v838 = vpow.pop %v837
      %v839 = vmul.f32 %v733, 1.442695
      %v840 = vpow.pop %v839
      %v841 = vmul.f32 %v734, 1.442695
      %v842 = vpow.pop %v841
      %v843 = vmul.f32 %v735, 1.442695
      %v844 = vpow.pop %v843
      %v845 = vmul.f32 %v736, 1.442695
      %v846 = vpow.pop %v845
      %v847 = vmul.f32 %v737, 1.442695
      %v848 = vpow.pop %v847
      %v849 = vmul.f32 %v738, 1.442695
      %v850 = vpow.pop %v849
      %v851 = vmul.f32 %v739, 1.442695
      %v852 = vpow.pop %v851
      %v853 = vmul.f32 %v740, 1.442695
      %v854 = vpow.pop %v853
      %v855 = vmul.f32 %v741, 1.442695
      %v856 = vpow.pop %v855
      %v857 = vmul.f32 %v742, 1.442695
      %v858 = vpow.pop %v857
      %v859 = vmul.f32 %v743, 1.442695
      %v860 = vpow.pop %v859
      %v861 = vmul.f32 %v744, 1.442695
      %v862 = vpow.pop %v861
      %v863 = vmul.f32 %v745, 1.442695
      %v864 = vpow.pop %v863
      %v865 = vmul.f32 %v746, 1.442695
      %v866 = vpow.pop %v865
      %v867 = vmul.f32 %v747, 1.442695
      %v868 = vpow.pop %v867
      %v869 = vmul.f32 %v748, 1.442695
      %v870 = vpow.pop %v869
      %v871 = vmul.f32 %v749, 1.442695
      %v872 = vpow.pop %v871
      %v873 = vmul.f32 %v750, 1.442695
      %v874 = vpow.pop %v873
      %v875 = vmul.f32 %v751, 1.442695
      %v876 = vpow.pop %v875
      %v877 = vmul.f32 %v752, 1.442695
      %v878 = vpow.pop %v877
      %v879 = vmul.f32 %v753, 1.442695
      %v880 = vpow.pop %v879
      %v881 = vmul.f32 %v754, 1.442695
      %v882 = vpow.pop %v881
      %v883 = vadd.f32 %v756, 1.0
      %v884 = vadd.f32 %v758, 1.0
      %v885 = vadd.f32 %v760, 1.0
      %v886 = vadd.f32 %v762, 1.0
      %v887 = vadd.f32 %v764, 1.0
      %v888 = vadd.f32 %v766, 1.0
      %v889 = vadd.f32 %v768, 1.0
      %v890 = vadd.f32 %v770, 1.0
      %v891 = vadd.f32 %v772, 1.0
      %v892 = vadd.f32 %v774, 1.0
      %v893 = vadd.f32 %v776, 1.0
      %v894 = vadd.f32 %v778, 1.0
      %v895 = vadd.f32 %v780, 1.0
      %v896 = vadd.f32 %v782, 1.0
      %v897 = vadd.f32 %v784, 1.0
      %v898 = vadd.f32 %v786, 1.0
      %v899 = vadd.f32 %v788, 1.0
      %v900 = vadd.f32 %v790, 1.0
      %v901 = vadd.f32 %v792, 1.0
      %v902 = vadd.f32 %v794, 1.0
      %v903 = vadd.f32 %v796, 1.0
      %v904 = vadd.f32 %v798, 1.0
      %v905 = vadd.f32 %v800, 1.0
      %v906 = vadd.f32 %v802, 1.0
      %v907 = vadd.f32 %v804, 1.0
      %v908 = vadd.f32 %v806, 1.0
      %v909 = vadd.f32 %v808, 1.0
      %v910 = vadd.f32 %v810, 1.0
      %v911 = vadd.f32 %v812, 1.0
      %v912 = vadd.f32 %v814, 1.0
      %v913 = vadd.f32 %v816, 1.0
      %v914 = vadd.f32 %v818, 1.0
      %v915 = vadd.f32 %v820, 1.0
      %v916 = vadd.f32 %v822, 1.0
      %v917 = vadd.f32 %v824, 1.0
      %v918 = vadd.f32 %v826, 1.0
      %v919 = vadd.f32 %v828, 1.0
      %v920 = vadd.f32 %v830, 1.0
      %v921 = vadd.f32 %v832, 1.0
      %v922 = vadd.f32 %v834, 1.0
      %v923 = vadd.f32 %v836, 1.0
      %v924 = vadd.f32 %v838, 1.0
      %v925 = vadd.f32 %v840, 1.0
      %v926 = vadd.f32 %v842, 1.0
      %v927 = vadd.f32 %v844, 1.0
      %v928 = vadd.f32 %v846, 1.0
      %v929 = vadd.f32 %v848, 1.0
      %v930 = vadd.f32 %v850, 1.0
      %v931 = vadd.f32 %v852, 1.0
      %v932 = vadd.f32 %v854, 1.0
      %v933 = vadd.f32 %v856, 1.0
      %v934 = vadd.f32 %v858, 1.0
      %v935 = vadd.f32 %v860, 1.0
      %v936 = vadd.f32 %v862, 1.0
      %v937 = vadd.f32 %v864, 1.0
      %v938 = vadd.f32 %v866, 1.0
      %v939 = vadd.f32 %v868, 1.0
      %v940 = vadd.f32 %v870, 1.0
      %v941 = vadd.f32 %v872, 1.0
      %v942 = vadd.f32 %v874, 1.0
      %v943 = vadd.f32 %v876, 1.0
      %v944 = vadd.f32 %v878, 1.0
      %v945 = vadd.f32 %v880, 1.0
      %v946 = vadd.f32 %v882, 1.0
      %v947 = vrcp.pop %v883
      %v948 = vmul.f32 %v883, %v947
      %v949 = vsub.f32 1.0, %v948
      %v950 = vmul.f32 %v947, %v949
      %v951 = vadd.f32 %v947, %v950
      %vm952 = vweird.f32 %v883
      %vm953 = vweird.f32 %v947
      %vm954 = vmor %vm952, %vm953
      %v955 = vsel %vm954, %v947, %v951
      %v956 = vand.u32 2147483647, %v883
      %vm957 = vcmp.eq.f32.partialorder %v956, 8.507059e+37
      %v958 = vand.u32 %v883, 2147483648
      %v959 = vor.u32 1.1754944e-38, %v958
      %v960 = vsel %vm957, %v959, %v955
      %v961 = vmul.f32 1.0, %v960
      %v962 = vrcp.pop %v884
      %v963 = vmul.f32 %v884, %v962
      %v964 = vsub.f32 1.0, %v963
      %v965 = vmul.f32 %v962, %v964
      %v966 = vadd.f32 %v962, %v965
      %vm967 = vweird.f32 %v884
      %vm968 = vweird.f32 %v962
      %vm969 = vmor %vm967, %vm968
      %v970 = vsel %vm969, %v962, %v966
      %v971 = vand.u32 2147483647, %v884
      %vm972 = vcmp.eq.f32.partialorder %v971, 8.507059e+37
      %v973 = vand.u32 %v884, 2147483648
      %v974 = vor.u32 1.1754944e-38, %v973
      %v975 = vsel %vm972, %v974, %v970
      %v976 = vmul.f32 1.0, %v975
      %v977 = vrcp.pop %v885
      %v978 = vmul.f32 %v885, %v977
      %v979 = vsub.f32 1.0, %v978
      %v980 = vmul.f32 %v977, %v979
      %v981 = vadd.f32 %v977, %v980
      %vm982 = vweird.f32 %v885
      %vm983 = vweird.f32 %v977
      %vm984 = vmor %vm982, %vm983
      %v985 = vsel %vm984, %v977, %v981
      %v986 = vand.u32 2147483647, %v885
      %vm987 = vcmp.eq.f32.partialorder %v986, 8.507059e+37
      %v988 = vand.u32 %v885, 2147483648
      %v989 = vor.u32 1.1754944e-38, %v988
      %v990 = vsel %vm987, %v989, %v985
      %v991 = vmul.f32 1.0, %v990
      %v992 = vrcp.pop %v886
      %v993 = vmul.f32 %v886, %v992
      %v994 = vsub.f32 1.0, %v993
      %v995 = vmul.f32 %v992, %v994
      %v996 = vadd.f32 %v992, %v995
      %vm997 = vweird.f32 %v886
      %vm998 = vweird.f32 %v992
      %vm999 = vmor %vm997, %vm998
      %v1000 = vsel %vm999, %v992, %v996
      %v1001 = vand.u32 2147483647, %v886
      %vm1002 = vcmp.eq.f32.partialorder %v1001, 8.507059e+37
      %v1003 = vand.u32 %v886, 2147483648
      %v1004 = vor.u32 1.1754944e-38, %v1003
      %v1005 = vsel %vm1002, %v1004, %v1000
      %v1006 = vmul.f32 1.0, %v1005
      %v1007 = vrcp.pop %v887
      %v1008 = vmul.f32 %v887, %v1007
      %v1009 = vsub.f32 1.0, %v1008
      %v1010 = vmul.f32 %v1007, %v1009
      %v1011 = vadd.f32 %v1007, %v1010
      %vm1012 = vweird.f32 %v887
      %vm1013 = vweird.f32 %v1007
      %vm1014 = vmor %vm1012, %vm1013
      %v1015 = vsel %vm1014, %v1007, %v1011
      %v1016 = vand.u32 2147483647, %v887
      %vm1017 = vcmp.eq.f32.partialorder %v1016, 8.507059e+37
      %v1018 = vand.u32 %v887, 2147483648
      %v1019 = vor.u32 1.1754944e-38, %v1018
      %v1020 = vsel %vm1017, %v1019, %v1015
      %v1021 = vmul.f32 1.0, %v1020
      %v1022 = vrcp.pop %v888
      %v1023 = vmul.f32 %v888, %v1022
      %v1024 = vsub.f32 1.0, %v1023
      %v1025 = vmul.f32 %v1022, %v1024
      %v1026 = vadd.f32 %v1022, %v1025
      %vm1027 = vweird.f32 %v888
      %vm1028 = vweird.f32 %v1022
      %vm1029 = vmor %vm1027, %vm1028
      %v1030 = vsel %vm1029, %v1022, %v1026
      %v1031 = vand.u32 2147483647, %v888
      %vm1032 = vcmp.eq.f32.partialorder %v1031, 8.507059e+37
      %v1033 = vand.u32 %v888, 2147483648
      %v1034 = vor.u32 1.1754944e-38, %v1033
      %v1035 = vsel %vm1032, %v1034, %v1030
      %v1036 = vmul.f32 1.0, %v1035
      %v1037 = vrcp.pop %v889
      %v1038 = vmul.f32 %v889, %v1037
      %v1039 = vsub.f32 1.0, %v1038
      %v1040 = vmul.f32 %v1037, %v1039
      %v1041 = vadd.f32 %v1037, %v1040
      %vm1042 = vweird.f32 %v889
      %vm1043 = vweird.f32 %v1037
      %vm1044 = vmor %vm1042, %vm1043
      %v1045 = vsel %vm1044, %v1037, %v1041
      %v1046 = vand.u32 2147483647, %v889
      %vm1047 = vcmp.eq.f32.partialorder %v1046, 8.507059e+37
      %v1048 = vand.u32 %v889, 2147483648
      %v1049 = vor.u32 1.1754944e-38, %v1048
      %v1050 = vsel %vm1047, %v1049, %v1045
      %v1051 = vmul.f32 1.0, %v1050
      %v1052 = vrcp.pop %v890
      %v1053 = vmul.f32 %v890, %v1052
      %v1054 = vsub.f32 1.0, %v1053
      %v1055 = vmul.f32 %v1052, %v1054
      %v1056 = vadd.f32 %v1052, %v1055
      %vm1057 = vweird.f32 %v890
      %vm1058 = vweird.f32 %v1052
      %vm1059 = vmor %vm1057, %vm1058
      %v1060 = vsel %vm1059, %v1052, %v1056
      %v1061 = vand.u32 2147483647, %v890
      %vm1062 = vcmp.eq.f32.partialorder %v1061, 8.507059e+37
      %v1063 = vand.u32 %v890, 2147483648
      %v1064 = vor.u32 1.1754944e-38, %v1063
      %v1065 = vsel %vm1062, %v1064, %v1060
      %v1066 = vmul.f32 1.0, %v1065
      %v1067 = vrcp.pop %v891
      %v1068 = vmul.f32 %v891, %v1067
      %v1069 = vsub.f32 1.0, %v1068
      %v1070 = vmul.f32 %v1067, %v1069
      %v1071 = vadd.f32 %v1067, %v1070
      %vm1072 = vweird.f32 %v891
      %vm1073 = vweird.f32 %v1067
      %vm1074 = vmor %vm1072, %vm1073
      %v1075 = vsel %vm1074, %v1067, %v1071
      %v1076 = vand.u32 2147483647, %v891
      %vm1077 = vcmp.eq.f32.partialorder %v1076, 8.507059e+37
      %v1078 = vand.u32 %v891, 2147483648
      %v1079 = vor.u32 1.1754944e-38, %v1078
      %v1080 = vsel %vm1077, %v1079, %v1075
      %v1081 = vmul.f32 1.0, %v1080
      %v1082 = vrcp.pop %v892
      %v1083 = vmul.f32 %v892, %v1082
      %v1084 = vsub.f32 1.0, %v1083
      %v1085 = vmul.f32 %v1082, %v1084
      %v1086 = vadd.f32 %v1082, %v1085
      %vm1087 = vweird.f32 %v892
      %vm1088 = vweird.f32 %v1082
      %vm1089 = vmor %vm1087, %vm1088
      %v1090 = vsel %vm1089, %v1082, %v1086
      %v1091 = vand.u32 2147483647, %v892
      %vm1092 = vcmp.eq.f32.partialorder %v1091, 8.507059e+37
      %v1093 = vand.u32 %v892, 2147483648
      %v1094 = vor.u32 1.1754944e-38, %v1093
      %v1095 = vsel %vm1092, %v1094, %v1090
      %v1096 = vmul.f32 1.0, %v1095
      %v1097 = vrcp.pop %v893
      %v1098 = vmul.f32 %v893, %v1097
      %v1099 = vsub.f32 1.0, %v1098
      %v1100 = vmul.f32 %v1097, %v1099
      %v1101 = vadd.f32 %v1097, %v1100
      %vm1102 = vweird.f32 %v893
      %vm1103 = vweird.f32 %v1097
      %vm1104 = vmor %vm1102, %vm1103
      %v1105 = vsel %vm1104, %v1097, %v1101
      %v1106 = vand.u32 2147483647, %v893
      %vm1107 = vcmp.eq.f32.partialorder %v1106, 8.507059e+37
      %v1108 = vand.u32 %v893, 2147483648
      %v1109 = vor.u32 1.1754944e-38, %v1108
      %v1110 = vsel %vm1107, %v1109, %v1105
      %v1111 = vmul.f32 1.0, %v1110
      %v1112 = vrcp.pop %v894
      %v1113 = vmul.f32 %v894, %v1112
      %v1114 = vsub.f32 1.0, %v1113
      %v1115 = vmul.f32 %v1112, %v1114
      %v1116 = vadd.f32 %v1112, %v1115
      %vm1117 = vweird.f32 %v894
      %vm1118 = vweird.f32 %v1112
      %vm1119 = vmor %vm1117, %vm1118
      %v1120 = vsel %vm1119, %v1112, %v1116
      %v1121 = vand.u32 2147483647, %v894
      %vm1122 = vcmp.eq.f32.partialorder %v1121, 8.507059e+37
      %v1123 = vand.u32 %v894, 2147483648
      %v1124 = vor.u32 1.1754944e-38, %v1123
      %v1125 = vsel %vm1122, %v1124, %v1120
      %v1126 = vmul.f32 1.0, %v1125
      %v1127 = vrcp.pop %v895
      %v1128 = vmul.f32 %v895, %v1127
      %v1129 = vsub.f32 1.0, %v1128
      %v1130 = vmul.f32 %v1127, %v1129
      %v1131 = vadd.f32 %v1127, %v1130
      %vm1132 = vweird.f32 %v895
      %vm1133 = vweird.f32 %v1127
      %vm1134 = vmor %vm1132, %vm1133
      %v1135 = vsel %vm1134, %v1127, %v1131
      %v1136 = vand.u32 2147483647, %v895
      %vm1137 = vcmp.eq.f32.partialorder %v1136, 8.507059e+37
      %v1138 = vand.u32 %v895, 2147483648
      %v1139 = vor.u32 1.1754944e-38, %v1138
      %v1140 = vsel %vm1137, %v1139, %v1135
      %v1141 = vmul.f32 1.0, %v1140
      %v1142 = vrcp.pop %v896
      %v1143 = vmul.f32 %v896, %v1142
      %v1144 = vsub.f32 1.0, %v1143
      %v1145 = vmul.f32 %v1142, %v1144
      %v1146 = vadd.f32 %v1142, %v1145
      %vm1147 = vweird.f32 %v896
      %vm1148 = vweird.f32 %v1142
      %vm1149 = vmor %vm1147, %vm1148
      %v1150 = vsel %vm1149, %v1142, %v1146
      %v1151 = vand.u32 2147483647, %v896
      %vm1152 = vcmp.eq.f32.partialorder %v1151, 8.507059e+37
      %v1153 = vand.u32 %v896, 2147483648
      %v1154 = vor.u32 1.1754944e-38, %v1153
      %v1155 = vsel %vm1152, %v1154, %v1150
      %v1156 = vmul.f32 1.0, %v1155
      %v1157 = vrcp.pop %v897
      %v1158 = vmul.f32 %v897, %v1157
      %v1159 = vsub.f32 1.0, %v1158
      %v1160 = vmul.f32 %v1157, %v1159
      %v1161 = vadd.f32 %v1157, %v1160
      %vm1162 = vweird.f32 %v897
      %vm1163 = vweird.f32 %v1157
      %vm1164 = vmor %vm1162, %vm1163
      %v1165 = vsel %vm1164, %v1157, %v1161
      %v1166 = vand.u32 2147483647, %v897
      %vm1167 = vcmp.eq.f32.partialorder %v1166, 8.507059e+37
      %v1168 = vand.u32 %v897, 2147483648
      %v1169 = vor.u32 1.1754944e-38, %v1168
      %v1170 = vsel %vm1167, %v1169, %v1165
      %v1171 = vmul.f32 1.0, %v1170
      %v1172 = vrcp.pop %v898
      %v1173 = vmul.f32 %v898, %v1172
      %v1174 = vsub.f32 1.0, %v1173
      %v1175 = vmul.f32 %v1172, %v1174
      %v1176 = vadd.f32 %v1172, %v1175
      %vm1177 = vweird.f32 %v898
      %vm1178 = vweird.f32 %v1172
      %vm1179 = vmor %vm1177, %vm1178
      %v1180 = vsel %vm1179, %v1172, %v1176
      %v1181 = vand.u32 2147483647, %v898
      %vm1182 = vcmp.eq.f32.partialorder %v1181, 8.507059e+37
      %v1183 = vand.u32 %v898, 2147483648
      %v1184 = vor.u32 1.1754944e-38, %v1183
      %v1185 = vsel %vm1182, %v1184, %v1180
      %v1186 = vmul.f32 1.0, %v1185
      %v1187 = vrcp.pop %v899
      %v1188 = vmul.f32 %v899, %v1187
      %v1189 = vsub.f32 1.0, %v1188
      %v1190 = vmul.f32 %v1187, %v1189
      %v1191 = vadd.f32 %v1187, %v1190
      %vm1192 = vweird.f32 %v899
      %vm1193 = vweird.f32 %v1187
      %vm1194 = vmor %vm1192, %vm1193
      %v1195 = vsel %vm1194, %v1187, %v1191
      %v1196 = vand.u32 2147483647, %v899
      %vm1197 = vcmp.eq.f32.partialorder %v1196, 8.507059e+37
      %v1198 = vand.u32 %v899, 2147483648
      %v1199 = vor.u32 1.1754944e-38, %v1198
      %v1200 = vsel %vm1197, %v1199, %v1195
      %v1201 = vmul.f32 1.0, %v1200
      %v1202 = vrcp.pop %v900
      %v1203 = vmul.f32 %v900, %v1202
      %v1204 = vsub.f32 1.0, %v1203
      %v1205 = vmul.f32 %v1202, %v1204
      %v1206 = vadd.f32 %v1202, %v1205
      %vm1207 = vweird.f32 %v900
      %vm1208 = vweird.f32 %v1202
      %vm1209 = vmor %vm1207, %vm1208
      %v1210 = vsel %vm1209, %v1202, %v1206
      %v1211 = vand.u32 2147483647, %v900
      %vm1212 = vcmp.eq.f32.partialorder %v1211, 8.507059e+37
      %v1213 = vand.u32 %v900, 2147483648
      %v1214 = vor.u32 1.1754944e-38, %v1213
      %v1215 = vsel %vm1212, %v1214, %v1210
      %v1216 = vmul.f32 1.0, %v1215
      %v1217 = vrcp.pop %v901
      %v1218 = vmul.f32 %v901, %v1217
      %v1219 = vsub.f32 1.0, %v1218
      %v1220 = vmul.f32 %v1217, %v1219
      %v1221 = vadd.f32 %v1217, %v1220
      %vm1222 = vweird.f32 %v901
      %vm1223 = vweird.f32 %v1217
      %vm1224 = vmor %vm1222, %vm1223
      %v1225 = vsel %vm1224, %v1217, %v1221
      %v1226 = vand.u32 2147483647, %v901
      %vm1227 = vcmp.eq.f32.partialorder %v1226, 8.507059e+37
      %v1228 = vand.u32 %v901, 2147483648
      %v1229 = vor.u32 1.1754944e-38, %v1228
      %v1230 = vsel %vm1227, %v1229, %v1225
      %v1231 = vmul.f32 1.0, %v1230
      %v1232 = vrcp.pop %v902
      %v1233 = vmul.f32 %v902, %v1232
      %v1234 = vsub.f32 1.0, %v1233
      %v1235 = vmul.f32 %v1232, %v1234
      %v1236 = vadd.f32 %v1232, %v1235
      %vm1237 = vweird.f32 %v902
      %vm1238 = vweird.f32 %v1232
      %vm1239 = vmor %vm1237, %vm1238
      %v1240 = vsel %vm1239, %v1232, %v1236
      %v1241 = vand.u32 2147483647, %v902
      %vm1242 = vcmp.eq.f32.partialorder %v1241, 8.507059e+37
      %v1243 = vand.u32 %v902, 2147483648
      %v1244 = vor.u32 1.1754944e-38, %v1243
      %v1245 = vsel %vm1242, %v1244, %v1240
      %v1246 = vmul.f32 1.0, %v1245
      %v1247 = vrcp.pop %v903
      %v1248 = vmul.f32 %v903, %v1247
      %v1249 = vsub.f32 1.0, %v1248
      %v1250 = vmul.f32 %v1247, %v1249
      %v1251 = vadd.f32 %v1247, %v1250
      %vm1252 = vweird.f32 %v903
      %vm1253 = vweird.f32 %v1247
      %vm1254 = vmor %vm1252, %vm1253
      %v1255 = vsel %vm1254, %v1247, %v1251
      %v1256 = vand.u32 2147483647, %v903
      %vm1257 = vcmp.eq.f32.partialorder %v1256, 8.507059e+37
      %v1258 = vand.u32 %v903, 2147483648
      %v1259 = vor.u32 1.1754944e-38, %v1258
      %v1260 = vsel %vm1257, %v1259, %v1255
      %v1261 = vmul.f32 1.0, %v1260
      %v1262 = vrcp.pop %v904
      %v1263 = vmul.f32 %v904, %v1262
      %v1264 = vsub.f32 1.0, %v1263
      %v1265 = vmul.f32 %v1262, %v1264
      %v1266 = vadd.f32 %v1262, %v1265
      %vm1267 = vweird.f32 %v904
      %vm1268 = vweird.f32 %v1262
      %vm1269 = vmor %vm1267, %vm1268
      %v1270 = vsel %vm1269, %v1262, %v1266
      %v1271 = vand.u32 2147483647, %v904
      %vm1272 = vcmp.eq.f32.partialorder %v1271, 8.507059e+37
      %v1273 = vand.u32 %v904, 2147483648
      %v1274 = vor.u32 1.1754944e-38, %v1273
      %v1275 = vsel %vm1272, %v1274, %v1270
      %v1276 = vmul.f32 1.0, %v1275
      %v1277 = vrcp.pop %v905
      %v1278 = vmul.f32 %v905, %v1277
      %v1279 = vsub.f32 1.0, %v1278
      %v1280 = vmul.f32 %v1277, %v1279
      %v1281 = vadd.f32 %v1277, %v1280
      %vm1282 = vweird.f32 %v905
      %vm1283 = vweird.f32 %v1277
      %vm1284 = vmor %vm1282, %vm1283
      %v1285 = vsel %vm1284, %v1277, %v1281
      %v1286 = vand.u32 2147483647, %v905
      %vm1287 = vcmp.eq.f32.partialorder %v1286, 8.507059e+37
      %v1288 = vand.u32 %v905, 2147483648
      %v1289 = vor.u32 1.1754944e-38, %v1288
      %v1290 = vsel %vm1287, %v1289, %v1285
      %v1291 = vmul.f32 1.0, %v1290
      %v1292 = vrcp.pop %v906
      %v1293 = vmul.f32 %v906, %v1292
      %v1294 = vsub.f32 1.0, %v1293
      %v1295 = vmul.f32 %v1292, %v1294
      %v1296 = vadd.f32 %v1292, %v1295
      %vm1297 = vweird.f32 %v906
      %vm1298 = vweird.f32 %v1292
      %vm1299 = vmor %vm1297, %vm1298
      %v1300 = vsel %vm1299, %v1292, %v1296
      %v1301 = vand.u32 2147483647, %v906
      %vm1302 = vcmp.eq.f32.partialorder %v1301, 8.507059e+37
      %v1303 = vand.u32 %v906, 2147483648
      %v1304 = vor.u32 1.1754944e-38, %v1303
      %v1305 = vsel %vm1302, %v1304, %v1300
      %v1306 = vmul.f32 1.0, %v1305
      %v1307 = vrcp.pop %v907
      %v1308 = vmul.f32 %v907, %v1307
      %v1309 = vsub.f32 1.0, %v1308
      %v1310 = vmul.f32 %v1307, %v1309
      %v1311 = vadd.f32 %v1307, %v1310
      %vm1312 = vweird.f32 %v907
      %vm1313 = vweird.f32 %v1307
      %vm1314 = vmor %vm1312, %vm1313
      %v1315 = vsel %vm1314, %v1307, %v1311
      %v1316 = vand.u32 2147483647, %v907
      %vm1317 = vcmp.eq.f32.partialorder %v1316, 8.507059e+37
      %v1318 = vand.u32 %v907, 2147483648
      %v1319 = vor.u32 1.1754944e-38, %v1318
      %v1320 = vsel %vm1317, %v1319, %v1315
      %v1321 = vmul.f32 1.0, %v1320
      %v1322 = vrcp.pop %v908
      %v1323 = vmul.f32 %v908, %v1322
      %v1324 = vsub.f32 1.0, %v1323
      %v1325 = vmul.f32 %v1322, %v1324
      %v1326 = vadd.f32 %v1322, %v1325
      %vm1327 = vweird.f32 %v908
      %vm1328 = vweird.f32 %v1322
      %vm1329 = vmor %vm1327, %vm1328
      %v1330 = vsel %vm1329, %v1322, %v1326
      %v1331 = vand.u32 2147483647, %v908
      %vm1332 = vcmp.eq.f32.partialorder %v1331, 8.507059e+37
      %v1333 = vand.u32 %v908, 2147483648
      %v1334 = vor.u32 1.1754944e-38, %v1333
      %v1335 = vsel %vm1332, %v1334, %v1330
      %v1336 = vmul.f32 1.0, %v1335
      %v1337 = vrcp.pop %v909
      %v1338 = vmul.f32 %v909, %v1337
      %v1339 = vsub.f32 1.0, %v1338
      %v1340 = vmul.f32 %v1337, %v1339
      %v1341 = vadd.f32 %v1337, %v1340
      %vm1342 = vweird.f32 %v909
      %vm1343 = vweird.f32 %v1337
      %vm1344 = vmor %vm1342, %vm1343
      %v1345 = vsel %vm1344, %v1337, %v1341
      %v1346 = vand.u32 2147483647, %v909
      %vm1347 = vcmp.eq.f32.partialorder %v1346, 8.507059e+37
      %v1348 = vand.u32 %v909, 2147483648
      %v1349 = vor.u32 1.1754944e-38, %v1348
      %v1350 = vsel %vm1347, %v1349, %v1345
      %v1351 = vmul.f32 1.0, %v1350
      %v1352 = vrcp.pop %v910
      %v1353 = vmul.f32 %v910, %v1352
      %v1354 = vsub.f32 1.0, %v1353
      %v1355 = vmul.f32 %v1352, %v1354
      %v1356 = vadd.f32 %v1352, %v1355
      %vm1357 = vweird.f32 %v910
      %vm1358 = vweird.f32 %v1352
      %vm1359 = vmor %vm1357, %vm1358
      %v1360 = vsel %vm1359, %v1352, %v1356
      %v1361 = vand.u32 2147483647, %v910
      %vm1362 = vcmp.eq.f32.partialorder %v1361, 8.507059e+37
      %v1363 = vand.u32 %v910, 2147483648
      %v1364 = vor.u32 1.1754944e-38, %v1363
      %v1365 = vsel %vm1362, %v1364, %v1360
      %v1366 = vmul.f32 1.0, %v1365
      %v1367 = vrcp.pop %v911
      %v1368 = vmul.f32 %v911, %v1367
      %v1369 = vsub.f32 1.0, %v1368
      %v1370 = vmul.f32 %v1367, %v1369
      %v1371 = vadd.f32 %v1367, %v1370
      %vm1372 = vweird.f32 %v911
      %vm1373 = vweird.f32 %v1367
      %vm1374 = vmor %vm1372, %vm1373
      %v1375 = vsel %vm1374, %v1367, %v1371
      %v1376 = vand.u32 2147483647, %v911
      %vm1377 = vcmp.eq.f32.partialorder %v1376, 8.507059e+37
      %v1378 = vand.u32 %v911, 2147483648
      %v1379 = vor.u32 1.1754944e-38, %v1378
      %v1380 = vsel %vm1377, %v1379, %v1375
      %v1381 = vmul.f32 1.0, %v1380
      %v1382 = vrcp.pop %v912
      %v1383 = vmul.f32 %v912, %v1382
      %v1384 = vsub.f32 1.0, %v1383
      %v1385 = vmul.f32 %v1382, %v1384
      %v1386 = vadd.f32 %v1382, %v1385
      %vm1387 = vweird.f32 %v912
      %vm1388 = vweird.f32 %v1382
      %vm1389 = vmor %vm1387, %vm1388
      %v1390 = vsel %vm1389, %v1382, %v1386
      %v1391 = vand.u32 2147483647, %v912
      %vm1392 = vcmp.eq.f32.partialorder %v1391, 8.507059e+37
      %v1393 = vand.u32 %v912, 2147483648
      %v1394 = vor.u32 1.1754944e-38, %v1393
      %v1395 = vsel %vm1392, %v1394, %v1390
      %v1396 = vmul.f32 1.0, %v1395
      %v1397 = vrcp.pop %v913
      %v1398 = vmul.f32 %v913, %v1397
      %v1399 = vsub.f32 1.0, %v1398
      %v1400 = vmul.f32 %v1397, %v1399
      %v1401 = vadd.f32 %v1397, %v1400
      %vm1402 = vweird.f32 %v913
      %vm1403 = vweird.f32 %v1397
      %vm1404 = vmor %vm1402, %vm1403
      %v1405 = vsel %vm1404, %v1397, %v1401
      %v1406 = vand.u32 2147483647, %v913
      %vm1407 = vcmp.eq.f32.partialorder %v1406, 8.507059e+37
      %v1408 = vand.u32 %v913, 2147483648
      %v1409 = vor.u32 1.1754944e-38, %v1408
      %v1410 = vsel %vm1407, %v1409, %v1405
      %v1411 = vmul.f32 1.0, %v1410
      %v1412 = vrcp.pop %v914
      %v1413 = vmul.f32 %v914, %v1412
      %v1414 = vsub.f32 1.0, %v1413
      %v1415 = vmul.f32 %v1412, %v1414
      %v1416 = vadd.f32 %v1412, %v1415
      %vm1417 = vweird.f32 %v914
      %vm1418 = vweird.f32 %v1412
      %vm1419 = vmor %vm1417, %vm1418
      %v1420 = vsel %vm1419, %v1412, %v1416
      %v1421 = vand.u32 2147483647, %v914
      %vm1422 = vcmp.eq.f32.partialorder %v1421, 8.507059e+37
      %v1423 = vand.u32 %v914, 2147483648
      %v1424 = vor.u32 1.1754944e-38, %v1423
      %v1425 = vsel %vm1422, %v1424, %v1420
      %v1426 = vmul.f32 1.0, %v1425
      %v1427 = vrcp.pop %v915
      %v1428 = vmul.f32 %v915, %v1427
      %v1429 = vsub.f32 1.0, %v1428
      %v1430 = vmul.f32 %v1427, %v1429
      %v1431 = vadd.f32 %v1427, %v1430
      %vm1432 = vweird.f32 %v915
      %vm1433 = vweird.f32 %v1427
      %vm1434 = vmor %vm1432, %vm1433
      %v1435 = vsel %vm1434, %v1427, %v1431
      %v1436 = vand.u32 2147483647, %v915
      %vm1437 = vcmp.eq.f32.partialorder %v1436, 8.507059e+37
      %v1438 = vand.u32 %v915, 2147483648
      %v1439 = vor.u32 1.1754944e-38, %v1438
      %v1440 = vsel %vm1437, %v1439, %v1435
      %v1441 = vmul.f32 1.0, %v1440
      %v1442 = vrcp.pop %v916
      %v1443 = vmul.f32 %v916, %v1442
      %v1444 = vsub.f32 1.0, %v1443
      %v1445 = vmul.f32 %v1442, %v1444
      %v1446 = vadd.f32 %v1442, %v1445
      %vm1447 = vweird.f32 %v916
      %vm1448 = vweird.f32 %v1442
      %vm1449 = vmor %vm1447, %vm1448
      %v1450 = vsel %vm1449, %v1442, %v1446
      %v1451 = vand.u32 2147483647, %v916
      %vm1452 = vcmp.eq.f32.partialorder %v1451, 8.507059e+37
      %v1453 = vand.u32 %v916, 2147483648
      %v1454 = vor.u32 1.1754944e-38, %v1453
      %v1455 = vsel %vm1452, %v1454, %v1450
      %v1456 = vmul.f32 1.0, %v1455
      %v1457 = vrcp.pop %v917
      %v1458 = vmul.f32 %v917, %v1457
      %v1459 = vsub.f32 1.0, %v1458
      %v1460 = vmul.f32 %v1457, %v1459
      %v1461 = vadd.f32 %v1457, %v1460
      %vm1462 = vweird.f32 %v917
      %vm1463 = vweird.f32 %v1457
      %vm1464 = vmor %vm1462, %vm1463
      %v1465 = vsel %vm1464, %v1457, %v1461
      %v1466 = vand.u32 2147483647, %v917
      %vm1467 = vcmp.eq.f32.partialorder %v1466, 8.507059e+37
      %v1468 = vand.u32 %v917, 2147483648
      %v1469 = vor.u32 1.1754944e-38, %v1468
      %v1470 = vsel %vm1467, %v1469, %v1465
      %v1471 = vmul.f32 1.0, %v1470
      %v1472 = vrcp.pop %v918
      %v1473 = vmul.f32 %v918, %v1472
      %v1474 = vsub.f32 1.0, %v1473
      %v1475 = vmul.f32 %v1472, %v1474
      %v1476 = vadd.f32 %v1472, %v1475
      %vm1477 = vweird.f32 %v918
      %vm1478 = vweird.f32 %v1472
      %vm1479 = vmor %vm1477, %vm1478
      %v1480 = vsel %vm1479, %v1472, %v1476
      %v1481 = vand.u32 2147483647, %v918
      %vm1482 = vcmp.eq.f32.partialorder %v1481, 8.507059e+37
      %v1483 = vand.u32 %v918, 2147483648
      %v1484 = vor.u32 1.1754944e-38, %v1483
      %v1485 = vsel %vm1482, %v1484, %v1480
      %v1486 = vmul.f32 1.0, %v1485
      %v1487 = vrcp.pop %v919
      %v1488 = vmul.f32 %v919, %v1487
      %v1489 = vsub.f32 1.0, %v1488
      %v1490 = vmul.f32 %v1487, %v1489
      %v1491 = vadd.f32 %v1487, %v1490
      %vm1492 = vweird.f32 %v919
      %vm1493 = vweird.f32 %v1487
      %vm1494 = vmor %vm1492, %vm1493
      %v1495 = vsel %vm1494, %v1487, %v1491
      %v1496 = vand.u32 2147483647, %v919
      %vm1497 = vcmp.eq.f32.partialorder %v1496, 8.507059e+37
      %v1498 = vand.u32 %v919, 2147483648
      %v1499 = vor.u32 1.1754944e-38, %v1498
      %v1500 = vsel %vm1497, %v1499, %v1495
      %v1501 = vmul.f32 1.0, %v1500
      %v1502 = vrcp.pop %v920
      %v1503 = vmul.f32 %v920, %v1502
      %v1504 = vsub.f32 1.0, %v1503
      %v1505 = vmul.f32 %v1502, %v1504
      %v1506 = vadd.f32 %v1502, %v1505
      %vm1507 = vweird.f32 %v920
      %vm1508 = vweird.f32 %v1502
      %vm1509 = vmor %vm1507, %vm1508
      %v1510 = vsel %vm1509, %v1502, %v1506
      %v1511 = vand.u32 2147483647, %v920
      %vm1512 = vcmp.eq.f32.partialorder %v1511, 8.507059e+37
      %v1513 = vand.u32 %v920, 2147483648
      %v1514 = vor.u32 1.1754944e-38, %v1513
      %v1515 = vsel %vm1512, %v1514, %v1510
      %v1516 = vmul.f32 1.0, %v1515
      %v1517 = vrcp.pop %v921
      %v1518 = vmul.f32 %v921, %v1517
      %v1519 = vsub.f32 1.0, %v1518
      %v1520 = vmul.f32 %v1517, %v1519
      %v1521 = vadd.f32 %v1517, %v1520
      %vm1522 = vweird.f32 %v921
      %vm1523 = vweird.f32 %v1517
      %vm1524 = vmor %vm1522, %vm1523
      %v1525 = vsel %vm1524, %v1517, %v1521
      %v1526 = vand.u32 2147483647, %v921
      %vm1527 = vcmp.eq.f32.partialorder %v1526, 8.507059e+37
      %v1528 = vand.u32 %v921, 2147483648
      %v1529 = vor.u32 1.1754944e-38, %v1528
      %v1530 = vsel %vm1527, %v1529, %v1525
      %v1531 = vmul.f32 1.0, %v1530
      %v1532 = vrcp.pop %v922
      %v1533 = vmul.f32 %v922, %v1532
      %v1534 = vsub.f32 1.0, %v1533
      %v1535 = vmul.f32 %v1532, %v1534
      %v1536 = vadd.f32 %v1532, %v1535
      %vm1537 = vweird.f32 %v922
      %vm1538 = vweird.f32 %v1532
      %vm1539 = vmor %vm1537, %vm1538
      %v1540 = vsel %vm1539, %v1532, %v1536
      %v1541 = vand.u32 2147483647, %v922
      %vm1542 = vcmp.eq.f32.partialorder %v1541, 8.507059e+37
      %v1543 = vand.u32 %v922, 2147483648
      %v1544 = vor.u32 1.1754944e-38, %v1543
      %v1545 = vsel %vm1542, %v1544, %v1540
      %v1546 = vmul.f32 1.0, %v1545
      %v1547 = vrcp.pop %v923
      %v1548 = vmul.f32 %v923, %v1547
      %v1549 = vsub.f32 1.0, %v1548
      %v1550 = vmul.f32 %v1547, %v1549
      %v1551 = vadd.f32 %v1547, %v1550
      %vm1552 = vweird.f32 %v923
      %vm1553 = vweird.f32 %v1547
      %vm1554 = vmor %vm1552, %vm1553
      %v1555 = vsel %vm1554, %v1547, %v1551
      %v1556 = vand.u32 2147483647, %v923
      %vm1557 = vcmp.eq.f32.partialorder %v1556, 8.507059e+37
      %v1558 = vand.u32 %v923, 2147483648
      %v1559 = vor.u32 1.1754944e-38, %v1558
      %v1560 = vsel %vm1557, %v1559, %v1555
      %v1561 = vmul.f32 1.0, %v1560
      %v1562 = vrcp.pop %v924
      %v1563 = vmul.f32 %v924, %v1562
      %v1564 = vsub.f32 1.0, %v1563
      %v1565 = vmul.f32 %v1562, %v1564
      %v1566 = vadd.f32 %v1562, %v1565
      %vm1567 = vweird.f32 %v924
      %vm1568 = vweird.f32 %v1562
      %vm1569 = vmor %vm1567, %vm1568
      %v1570 = vsel %vm1569, %v1562, %v1566
      %v1571 = vand.u32 2147483647, %v924
      %vm1572 = vcmp.eq.f32.partialorder %v1571, 8.507059e+37
      %v1573 = vand.u32 %v924, 2147483648
      %v1574 = vor.u32 1.1754944e-38, %v1573
      %v1575 = vsel %vm1572, %v1574, %v1570
      %v1576 = vmul.f32 1.0, %v1575
      %v1577 = vrcp.pop %v925
      %v1578 = vmul.f32 %v925, %v1577
      %v1579 = vsub.f32 1.0, %v1578
      %v1580 = vmul.f32 %v1577, %v1579
      %v1581 = vadd.f32 %v1577, %v1580
      %vm1582 = vweird.f32 %v925
      %vm1583 = vweird.f32 %v1577
      %vm1584 = vmor %vm1582, %vm1583
      %v1585 = vsel %vm1584, %v1577, %v1581
      %v1586 = vand.u32 2147483647, %v925
      %vm1587 = vcmp.eq.f32.partialorder %v1586, 8.507059e+37
      %v1588 = vand.u32 %v925, 2147483648
      %v1589 = vor.u32 1.1754944e-38, %v1588
      %v1590 = vsel %vm1587, %v1589, %v1585
      %v1591 = vmul.f32 1.0, %v1590
      %v1592 = vrcp.pop %v926
      %v1593 = vmul.f32 %v926, %v1592
      %v1594 = vsub.f32 1.0, %v1593
      %v1595 = vmul.f32 %v1592, %v1594
      %v1596 = vadd.f32 %v1592, %v1595
      %vm1597 = vweird.f32 %v926
      %vm1598 = vweird.f32 %v1592
      %vm1599 = vmor %vm1597, %vm1598
      %v1600 = vsel %vm1599, %v1592, %v1596
      %v1601 = vand.u32 2147483647, %v926
      %vm1602 = vcmp.eq.f32.partialorder %v1601, 8.507059e+37
      %v1603 = vand.u32 %v926, 2147483648
      %v1604 = vor.u32 1.1754944e-38, %v1603
      %v1605 = vsel %vm1602, %v1604, %v1600
      %v1606 = vmul.f32 1.0, %v1605
      %v1607 = vrcp.pop %v927
      %v1608 = vmul.f32 %v927, %v1607
      %v1609 = vsub.f32 1.0, %v1608
      %v1610 = vmul.f32 %v1607, %v1609
      %v1611 = vadd.f32 %v1607, %v1610
      %vm1612 = vweird.f32 %v927
      %vm1613 = vweird.f32 %v1607
      %vm1614 = vmor %vm1612, %vm1613
      %v1615 = vsel %vm1614, %v1607, %v1611
      %v1616 = vand.u32 2147483647, %v927
      %vm1617 = vcmp.eq.f32.partialorder %v1616, 8.507059e+37
      %v1618 = vand.u32 %v927, 2147483648
      %v1619 = vor.u32 1.1754944e-38, %v1618
      %v1620 = vsel %vm1617, %v1619, %v1615
      %v1621 = vmul.f32 1.0, %v1620
      %v1622 = vrcp.pop %v928
      %v1623 = vmul.f32 %v928, %v1622
      %v1624 = vsub.f32 1.0, %v1623
      %v1625 = vmul.f32 %v1622, %v1624
      %v1626 = vadd.f32 %v1622, %v1625
      %vm1627 = vweird.f32 %v928
      %vm1628 = vweird.f32 %v1622
      %vm1629 = vmor %vm1627, %vm1628
      %v1630 = vsel %vm1629, %v1622, %v1626
      %v1631 = vand.u32 2147483647, %v928
      %vm1632 = vcmp.eq.f32.partialorder %v1631, 8.507059e+37
      %v1633 = vand.u32 %v928, 2147483648
      %v1634 = vor.u32 1.1754944e-38, %v1633
      %v1635 = vsel %vm1632, %v1634, %v1630
      %v1636 = vmul.f32 1.0, %v1635
      %v1637 = vrcp.pop %v929
      %v1638 = vmul.f32 %v929, %v1637
      %v1639 = vsub.f32 1.0, %v1638
      %v1640 = vmul.f32 %v1637, %v1639
      %v1641 = vadd.f32 %v1637, %v1640
      %vm1642 = vweird.f32 %v929
      %vm1643 = vweird.f32 %v1637
      %vm1644 = vmor %vm1642, %vm1643
      %v1645 = vsel %vm1644, %v1637, %v1641
      %v1646 = vand.u32 2147483647, %v929
      %vm1647 = vcmp.eq.f32.partialorder %v1646, 8.507059e+37
      %v1648 = vand.u32 %v929, 2147483648
      %v1649 = vor.u32 1.1754944e-38, %v1648
      %v1650 = vsel %vm1647, %v1649, %v1645
      %v1651 = vmul.f32 1.0, %v1650
      %v1652 = vrcp.pop %v930
      %v1653 = vmul.f32 %v930, %v1652
      %v1654 = vsub.f32 1.0, %v1653
      %v1655 = vmul.f32 %v1652, %v1654
      %v1656 = vadd.f32 %v1652, %v1655
      %vm1657 = vweird.f32 %v930
      %vm1658 = vweird.f32 %v1652
      %vm1659 = vmor %vm1657, %vm1658
      %v1660 = vsel %vm1659, %v1652, %v1656
      %v1661 = vand.u32 2147483647, %v930
      %vm1662 = vcmp.eq.f32.partialorder %v1661, 8.507059e+37
      %v1663 = vand.u32 %v930, 2147483648
      %v1664 = vor.u32 1.1754944e-38, %v1663
      %v1665 = vsel %vm1662, %v1664, %v1660
      %v1666 = vmul.f32 1.0, %v1665
      %v1667 = vrcp.pop %v931
      %v1668 = vmul.f32 %v931, %v1667
      %v1669 = vsub.f32 1.0, %v1668
      %v1670 = vmul.f32 %v1667, %v1669
      %v1671 = vadd.f32 %v1667, %v1670
      %vm1672 = vweird.f32 %v931
      %vm1673 = vweird.f32 %v1667
      %vm1674 = vmor %vm1672, %vm1673
      %v1675 = vsel %vm1674, %v1667, %v1671
      %v1676 = vand.u32 2147483647, %v931
      %vm1677 = vcmp.eq.f32.partialorder %v1676, 8.507059e+37
      %v1678 = vand.u32 %v931, 2147483648
      %v1679 = vor.u32 1.1754944e-38, %v1678
      %v1680 = vsel %vm1677, %v1679, %v1675
      %v1681 = vmul.f32 1.0, %v1680
      %v1682 = vrcp.pop %v932
      %v1683 = vmul.f32 %v932, %v1682
      %v1684 = vsub.f32 1.0, %v1683
      %v1685 = vmul.f32 %v1682, %v1684
      %v1686 = vadd.f32 %v1682, %v1685
      %vm1687 = vweird.f32 %v932
      %vm1688 = vweird.f32 %v1682
      %vm1689 = vmor %vm1687, %vm1688
      %v1690 = vsel %vm1689, %v1682, %v1686
      %v1691 = vand.u32 2147483647, %v932
      %vm1692 = vcmp.eq.f32.partialorder %v1691, 8.507059e+37
      %v1693 = vand.u32 %v932, 2147483648
      %v1694 = vor.u32 1.1754944e-38, %v1693
      %v1695 = vsel %vm1692, %v1694, %v1690
      %v1696 = vmul.f32 1.0, %v1695
      %v1697 = vrcp.pop %v933
      %v1698 = vmul.f32 %v933, %v1697
      %v1699 = vsub.f32 1.0, %v1698
      %v1700 = vmul.f32 %v1697, %v1699
      %v1701 = vadd.f32 %v1697, %v1700
      %vm1702 = vweird.f32 %v933
      %vm1703 = vweird.f32 %v1697
      %vm1704 = vmor %vm1702, %vm1703
      %v1705 = vsel %vm1704, %v1697, %v1701
      %v1706 = vand.u32 2147483647, %v933
      %vm1707 = vcmp.eq.f32.partialorder %v1706, 8.507059e+37
      %v1708 = vand.u32 %v933, 2147483648
      %v1709 = vor.u32 1.1754944e-38, %v1708
      %v1710 = vsel %vm1707, %v1709, %v1705
      %v1711 = vmul.f32 1.0, %v1710
      %v1712 = vrcp.pop %v934
      %v1713 = vmul.f32 %v934, %v1712
      %v1714 = vsub.f32 1.0, %v1713
      %v1715 = vmul.f32 %v1712, %v1714
      %v1716 = vadd.f32 %v1712, %v1715
      %vm1717 = vweird.f32 %v934
      %vm1718 = vweird.f32 %v1712
      %vm1719 = vmor %vm1717, %vm1718
      %v1720 = vsel %vm1719, %v1712, %v1716
      %v1721 = vand.u32 2147483647, %v934
      %vm1722 = vcmp.eq.f32.partialorder %v1721, 8.507059e+37
      %v1723 = vand.u32 %v934, 2147483648
      %v1724 = vor.u32 1.1754944e-38, %v1723
      %v1725 = vsel %vm1722, %v1724, %v1720
      %v1726 = vmul.f32 1.0, %v1725
      %v1727 = vrcp.pop %v935
      %v1728 = vmul.f32 %v935, %v1727
      %v1729 = vsub.f32 1.0, %v1728
      %v1730 = vmul.f32 %v1727, %v1729
      %v1731 = vadd.f32 %v1727, %v1730
      %vm1732 = vweird.f32 %v935
      %vm1733 = vweird.f32 %v1727
      %vm1734 = vmor %vm1732, %vm1733
      %v1735 = vsel %vm1734, %v1727, %v1731
      %v1736 = vand.u32 2147483647, %v935
      %vm1737 = vcmp.eq.f32.partialorder %v1736, 8.507059e+37
      %v1738 = vand.u32 %v935, 2147483648
      %v1739 = vor.u32 1.1754944e-38, %v1738
      %v1740 = vsel %vm1737, %v1739, %v1735
      %v1741 = vmul.f32 1.0, %v1740
      %v1742 = vrcp.pop %v936
      %v1743 = vmul.f32 %v936, %v1742
      %v1744 = vsub.f32 1.0, %v1743
      %v1745 = vmul.f32 %v1742, %v1744
      %v1746 = vadd.f32 %v1742, %v1745
      %vm1747 = vweird.f32 %v936
      %vm1748 = vweird.f32 %v1742
      %vm1749 = vmor %vm1747, %vm1748
      %v1750 = vsel %vm1749, %v1742, %v1746
      %v1751 = vand.u32 2147483647, %v936
      %vm1752 = vcmp.eq.f32.partialorder %v1751, 8.507059e+37
      %v1753 = vand.u32 %v936, 2147483648
      %v1754 = vor.u32 1.1754944e-38, %v1753
      %v1755 = vsel %vm1752, %v1754, %v1750
      %v1756 = vmul.f32 1.0, %v1755
      %v1757 = vrcp.pop %v937
      %v1758 = vmul.f32 %v937, %v1757
      %v1759 = vsub.f32 1.0, %v1758
      %v1760 = vmul.f32 %v1757, %v1759
      %v1761 = vadd.f32 %v1757, %v1760
      %vm1762 = vweird.f32 %v937
      %vm1763 = vweird.f32 %v1757
      %vm1764 = vmor %vm1762, %vm1763
      %v1765 = vsel %vm1764, %v1757, %v1761
      %v1766 = vand.u32 2147483647, %v937
      %vm1767 = vcmp.eq.f32.partialorder %v1766, 8.507059e+37
      %v1768 = vand.u32 %v937, 2147483648
      %v1769 = vor.u32 1.1754944e-38, %v1768
      %v1770 = vsel %vm1767, %v1769, %v1765
      %v1771 = vmul.f32 1.0, %v1770
      %v1772 = vrcp.pop %v938
      %v1773 = vmul.f32 %v938, %v1772
      %v1774 = vsub.f32 1.0, %v1773
      %v1775 = vmul.f32 %v1772, %v1774
      %v1776 = vadd.f32 %v1772, %v1775
      %vm1777 = vweird.f32 %v938
      %vm1778 = vweird.f32 %v1772
      %vm1779 = vmor %vm1777, %vm1778
      %v1780 = vsel %vm1779, %v1772, %v1776
      %v1781 = vand.u32 2147483647, %v938
      %vm1782 = vcmp.eq.f32.partialorder %v1781, 8.507059e+37
      %v1783 = vand.u32 %v938, 2147483648
      %v1784 = vor.u32 1.1754944e-38, %v1783
      %v1785 = vsel %vm1782, %v1784, %v1780
      %v1786 = vmul.f32 1.0, %v1785
      %v1787 = vrcp.pop %v939
      %v1788 = vmul.f32 %v939, %v1787
      %v1789 = vsub.f32 1.0, %v1788
      %v1790 = vmul.f32 %v1787, %v1789
      %v1791 = vadd.f32 %v1787, %v1790
      %vm1792 = vweird.f32 %v939
      %vm1793 = vweird.f32 %v1787
      %vm1794 = vmor %vm1792, %vm1793
      %v1795 = vsel %vm1794, %v1787, %v1791
      %v1796 = vand.u32 2147483647, %v939
      %vm1797 = vcmp.eq.f32.partialorder %v1796, 8.507059e+37
      %v1798 = vand.u32 %v939, 2147483648
      %v1799 = vor.u32 1.1754944e-38, %v1798
      %v1800 = vsel %vm1797, %v1799, %v1795
      %v1801 = vmul.f32 1.0, %v1800
      %v1802 = vrcp.pop %v940
      %v1803 = vmul.f32 %v940, %v1802
      %v1804 = vsub.f32 1.0, %v1803
      %v1805 = vmul.f32 %v1802, %v1804
      %v1806 = vadd.f32 %v1802, %v1805
      %vm1807 = vweird.f32 %v940
      %vm1808 = vweird.f32 %v1802
      %vm1809 = vmor %vm1807, %vm1808
      %v1810 = vsel %vm1809, %v1802, %v1806
      %v1811 = vand.u32 2147483647, %v940
      %vm1812 = vcmp.eq.f32.partialorder %v1811, 8.507059e+37
      %v1813 = vand.u32 %v940, 2147483648
      %v1814 = vor.u32 1.1754944e-38, %v1813
      %v1815 = vsel %vm1812, %v1814, %v1810
      %v1816 = vmul.f32 1.0, %v1815
      %v1817 = vrcp.pop %v941
      %v1818 = vmul.f32 %v941, %v1817
      %v1819 = vsub.f32 1.0, %v1818
      %v1820 = vmul.f32 %v1817, %v1819
      %v1821 = vadd.f32 %v1817, %v1820
      %vm1822 = vweird.f32 %v941
      %vm1823 = vweird.f32 %v1817
      %vm1824 = vmor %vm1822, %vm1823
      %v1825 = vsel %vm1824, %v1817, %v1821
      %v1826 = vand.u32 2147483647, %v941
      %vm1827 = vcmp.eq.f32.partialorder %v1826, 8.507059e+37
      %v1828 = vand.u32 %v941, 2147483648
      %v1829 = vor.u32 1.1754944e-38, %v1828
      %v1830 = vsel %vm1827, %v1829, %v1825
      %v1831 = vmul.f32 1.0, %v1830
      %v1832 = vrcp.pop %v942
      %v1833 = vmul.f32 %v942, %v1832
      %v1834 = vsub.f32 1.0, %v1833
      %v1835 = vmul.f32 %v1832, %v1834
      %v1836 = vadd.f32 %v1832, %v1835
      %vm1837 = vweird.f32 %v942
      %vm1838 = vweird.f32 %v1832
      %vm1839 = vmor %vm1837, %vm1838
      %v1840 = vsel %vm1839, %v1832, %v1836
      %v1841 = vand.u32 2147483647, %v942
      %vm1842 = vcmp.eq.f32.partialorder %v1841, 8.507059e+37
      %v1843 = vand.u32 %v942, 2147483648
      %v1844 = vor.u32 1.1754944e-38, %v1843
      %v1845 = vsel %vm1842, %v1844, %v1840
      %v1846 = vmul.f32 1.0, %v1845
      %v1847 = vrcp.pop %v943
      %v1848 = vmul.f32 %v943, %v1847
      %v1849 = vsub.f32 1.0, %v1848
      %v1850 = vmul.f32 %v1847, %v1849
      %v1851 = vadd.f32 %v1847, %v1850
      %vm1852 = vweird.f32 %v943
      %vm1853 = vweird.f32 %v1847
      %vm1854 = vmor %vm1852, %vm1853
      %v1855 = vsel %vm1854, %v1847, %v1851
      %v1856 = vand.u32 2147483647, %v943
      %vm1857 = vcmp.eq.f32.partialorder %v1856, 8.507059e+37
      %v1858 = vand.u32 %v943, 2147483648
      %v1859 = vor.u32 1.1754944e-38, %v1858
      %v1860 = vsel %vm1857, %v1859, %v1855
      %v1861 = vmul.f32 1.0, %v1860
      %v1862 = vrcp.pop %v944
      %v1863 = vmul.f32 %v944, %v1862
      %v1864 = vsub.f32 1.0, %v1863
      %v1865 = vmul.f32 %v1862, %v1864
      %v1866 = vadd.f32 %v1862, %v1865
      %vm1867 = vweird.f32 %v944
      %vm1868 = vweird.f32 %v1862
      %vm1869 = vmor %vm1867, %vm1868
      %v1870 = vsel %vm1869, %v1862, %v1866
      %v1871 = vand.u32 2147483647, %v944
      %vm1872 = vcmp.eq.f32.partialorder %v1871, 8.507059e+37
      %v1873 = vand.u32 %v944, 2147483648
      %v1874 = vor.u32 1.1754944e-38, %v1873
      %v1875 = vsel %vm1872, %v1874, %v1870
      %v1876 = vmul.f32 1.0, %v1875
      %v1877 = vrcp.pop %v945
      %v1878 = vmul.f32 %v945, %v1877
      %v1879 = vsub.f32 1.0, %v1878
      %v1880 = vmul.f32 %v1877, %v1879
      %v1881 = vadd.f32 %v1877, %v1880
      %vm1882 = vweird.f32 %v945
      %vm1883 = vweird.f32 %v1877
      %vm1884 = vmor %vm1882, %vm1883
      %v1885 = vsel %vm1884, %v1877, %v1881
      %v1886 = vand.u32 2147483647, %v945
      %vm1887 = vcmp.eq.f32.partialorder %v1886, 8.507059e+37
      %v1888 = vand.u32 %v945, 2147483648
      %v1889 = vor.u32 1.1754944e-38, %v1888
      %v1890 = vsel %vm1887, %v1889, %v1885
      %v1891 = vmul.f32 1.0, %v1890
      %v1892 = vrcp.pop %v946
      %v1893 = vmul.f32 %v946, %v1892
      %v1894 = vsub.f32 1.0, %v1893
      %v1895 = vmul.f32 %v1892, %v1894
      %v1896 = vadd.f32 %v1892, %v1895
      %vm1897 = vweird.f32 %v946
      %vm1898 = vweird.f32 %v1892
      %vm1899 = vmor %vm1897, %vm1898
      %v1900 = vsel %vm1899, %v1892, %v1896
      %v1901 = vand.u32 2147483647, %v946
      %vm1902 = vcmp.eq.f32.partialorder %v1901, 8.507059e+37
      %v1903 = vand.u32 %v946, 2147483648
      %v1904 = vor.u32 1.1754944e-38, %v1903
      %v1905 = vsel %vm1902, %v1904, %v1900
      %v1906 = vmul.f32 1.0, %v1905
      %v1907 = vmul.f32 %v532, %v961
      %v1908 = vmul.f32 %v534, %v976
      %v1909 = vmul.f32 %v537, %v991
      %v1910 = vmul.f32 %v539, %v1006
      %v1911 = vmul.f32 %v542, %v1021
      %v1912 = vmul.f32 %v544, %v1036
      %v1913 = vmul.f32 %v547, %v1051
      %v1914 = vmul.f32 %v549, %v1066
      %v1915 = vmul.f32 %v552, %v1081
      %v1916 = vmul.f32 %v554, %v1096
      %v1917 = vmul.f32 %v557, %v1111
      %v1918 = vmul.f32 %v559, %v1126
      %v1919 = vmul.f32 %v562, %v1141
      %v1920 = vmul.f32 %v564, %v1156
      %v1921 = vmul.f32 %v567, %v1171
      %v1922 = vmul.f32 %v569, %v1186
      %v1923 = vmul.f32 %v572, %v1201
      %v1924 = vmul.f32 %v574, %v1216
      %v1925 = vmul.f32 %v577, %v1231
      %v1926 = vmul.f32 %v579, %v1246
      %v1927 = vmul.f32 %v582, %v1261
      %v1928 = vmul.f32 %v584, %v1276
      %v1929 = vmul.f32 %v587, %v1291
      %v1930 = vmul.f32 %v589, %v1306
      %v1931 = vmul.f32 %v592, %v1321
      %v1932 = vmul.f32 %v594, %v1336
      %v1933 = vmul.f32 %v597, %v1351
      %v1934 = vmul.f32 %v599, %v1366
      %v1935 = vmul.f32 %v602, %v1381
      %v1936 = vmul.f32 %v604, %v1396
      %v1937 = vmul.f32 %v607, %v1411
      %v1938 = vmul.f32 %v609, %v1426
      %v1939 = vmul.f32 %v612, %v1441
      %v1940 = vmul.f32 %v614, %v1456
      %v1941 = vmul.f32 %v617, %v1471
      %v1942 = vmul.f32 %v619, %v1486
      %v1943 = vmul.f32 %v622, %v1501
      %v1944 = vmul.f32 %v624, %v1516
      %v1945 = vmul.f32 %v627, %v1531
      %v1946 = vmul.f32 %v629, %v1546
      %v1947 = vmul.f32 %v632, %v1561
      %v1948 = vmul.f32 %v634, %v1576
      %v1949 = vmul.f32 %v637, %v1591
      %v1950 = vmul.f32 %v639, %v1606
      %v1951 = vmul.f32 %v642, %v1621
      %v1952 = vmul.f32 %v644, %v1636
      %v1953 = vmul.f32 %v647, %v1651
      %v1954 = vmul.f32 %v649, %v1666
      %v1955 = vmul.f32 %v652, %v1681
      %v1956 = vmul.f32 %v654, %v1696
      %v1957 = vmul.f32 %v657, %v1711
      %v1958 = vmul.f32 %v659, %v1726
      %v1959 = vmul.f32 %v662, %v1741
      %v1960 = vmul.f32 %v664, %v1756
      %v1961 = vmul.f32 %v667, %v1771
      %v1962 = vmul.f32 %v669, %v1786
      %v1963 = vmul.f32 %v672, %v1801
      %v1964 = vmul.f32 %v674, %v1816
      %v1965 = vmul.f32 %v677, %v1831
      %v1966 = vmul.f32 %v679, %v1846
      %v1967 = vmul.f32 %v682, %v1861
      %v1968 = vmul.f32 %v684, %v1876
      %v1969 = vmul.f32 %v687, %v1891
      %v1970 = vmul.f32 %v689, %v1906
      %v1971 = vpack.c.bf16 %v1907, %v1907
      %v1972 = vpack.c.bf16 %v1908, %v1908
      %v1973 = vpack.c.bf16 %v1909, %v1909
      %v1974 = vpack.c.bf16 %v1910, %v1910
      %v1975 = vpack.c.bf16 %v1911, %v1911
      %v1976 = vpack.c.bf16 %v1912, %v1912
      %v1977 = vpack.c.bf16 %v1913, %v1913
      %v1978 = vpack.c.bf16 %v1914, %v1914
      %v1979 = vpack.c.bf16 %v1915, %v1915
      %v1980 = vpack.c.bf16 %v1916, %v1916
      %v1981 = vpack.c.bf16 %v1917, %v1917
      %v1982 = vpack.c.bf16 %v1918, %v1918
      %v1983 = vpack.c.bf16 %v1919, %v1919
      %v1984 = vpack.c.bf16 %v1920, %v1920
      %v1985 = vpack.c.bf16 %v1921, %v1921
      %v1986 = vpack.c.bf16 %v1922, %v1922
      %v1987 = vpack.c.bf16 %v1923, %v1923
      %v1988 = vpack.c.bf16 %v1924, %v1924
      %v1989 = vpack.c.bf16 %v1925, %v1925
      %v1990 = vpack.c.bf16 %v1926, %v1926
      %v1991 = vpack.c.bf16 %v1927, %v1927
      %v1992 = vpack.c.bf16 %v1928, %v1928
      %v1993 = vpack.c.bf16 %v1929, %v1929
      %v1994 = vpack.c.bf16 %v1930, %v1930
      %v1995 = vpack.c.bf16 %v1931, %v1931
      %v1996 = vpack.c.bf16 %v1932, %v1932
      %v1997 = vpack.c.bf16 %v1933, %v1933
      %v1998 = vpack.c.bf16 %v1934, %v1934
      %v1999 = vpack.c.bf16 %v1935, %v1935
      %v2000 = vpack.c.bf16 %v1936, %v1936
      %v2001 = vpack.c.bf16 %v1937, %v1937
      %v2002 = vpack.c.bf16 %v1938, %v1938
      %v2003 = vpack.c.bf16 %v1939, %v1939
      %v2004 = vpack.c.bf16 %v1940, %v1940
      %v2005 = vpack.c.bf16 %v1941, %v1941
      %v2006 = vpack.c.bf16 %v1942, %v1942
      %v2007 = vpack.c.bf16 %v1943, %v1943
      %v2008 = vpack.c.bf16 %v1944, %v1944
      %v2009 = vpack.c.bf16 %v1945, %v1945
      %v2010 = vpack.c.bf16 %v1946, %v1946
      %v2011 = vpack.c.bf16 %v1947, %v1947
      %v2012 = vpack.c.bf16 %v1948, %v1948
      %v2013 = vpack.c.bf16 %v1949, %v1949
      %v2014 = vpack.c.bf16 %v1950, %v1950
      %v2015 = vpack.c.bf16 %v1951, %v1951
      %v2016 = vpack.c.bf16 %v1952, %v1952
      %v2017 = vpack.c.bf16 %v1953, %v1953
      %v2018 = vpack.c.bf16 %v1954, %v1954
      %v2019 = vpack.c.bf16 %v1955, %v1955
      %v2020 = vpack.c.bf16 %v1956, %v1956
      %v2021 = vpack.c.bf16 %v1957, %v1957
      %v2022 = vpack.c.bf16 %v1958, %v1958
      %v2023 = vpack.c.bf16 %v1959, %v1959
      %v2024 = vpack.c.bf16 %v1960, %v1960
      %v2025 = vpack.c.bf16 %v1961, %v1961
      %v2026 = vpack.c.bf16 %v1962, %v1962
      %v2027 = vpack.c.bf16 %v1963, %v1963
      %v2028 = vpack.c.bf16 %v1964, %v1964
      %v2029 = vpack.c.bf16 %v1965, %v1965
      %v2030 = vpack.c.bf16 %v1966, %v1966
      %v2031 = vpack.c.bf16 %v1967, %v1967
      %v2032 = vpack.c.bf16 %v1968, %v1968
      %v2033 = vpack.c.bf16 %v1969, %v1969
      %v2034 = vpack.c.bf16 %v1970, %v1970
      %vm2035 = vcmask 125952
      %2036 = vst.msk [vmem:[%s172] sm:$0xf] %vm2035, %v1971
      %2037 = vst.msk [vmem:[%s172 + $0x4] sm:$0xf] %vm2035, %v1972
      %2038 = vst.msk [vmem:[%s172 + $0x8] sm:$0xf] %vm2035, %v1973
      %2039 = vst.msk [vmem:[%s172 + $0xc] sm:$0xf] %vm2035, %v1974
      %2040 = vst.msk [vmem:[%s172 + $0x10] sm:$0xf] %vm2035, %v1975
      %2041 = vst.msk [vmem:[%s172 + $0x14] sm:$0xf] %vm2035, %v1976
      %2042 = vst.msk [vmem:[%s172 + $0x18] sm:$0xf] %vm2035, %v1977
      %2043 = vst.msk [vmem:[%s172 + $0x1c] sm:$0xf] %vm2035, %v1978
      %2044 = vst.msk [vmem:[%s172 + $0x20] sm:$0xf] %vm2035, %v1979
      %2045 = vst.msk [vmem:[%s172 + $0x24] sm:$0xf] %vm2035, %v1980
      %2046 = vst.msk [vmem:[%s172 + $0x28] sm:$0xf] %vm2035, %v1981
      %2047 = vst.msk [vmem:[%s172 + $0x2c] sm:$0xf] %vm2035, %v1982
      %2048 = vst.msk [vmem:[%s172 + $0x30] sm:$0xf] %vm2035, %v1983
      %2049 = vst.msk [vmem:[%s172 + $0x34] sm:$0xf] %vm2035, %v1984
      %2050 = vst.msk [vmem:[%s172 + $0x38] sm:$0xf] %vm2035, %v1985
      %2051 = vst.msk [vmem:[%s172 + $0x3c] sm:$0xf] %vm2035, %v1986
      %2052 = vst.msk [vmem:[%s172 + $0x40] sm:$0xf] %vm2035, %v1987
      %2053 = vst.msk [vmem:[%s172 + $0x44] sm:$0xf] %vm2035, %v1988
      %2054 = vst.msk [vmem:[%s172 + $0x48] sm:$0xf] %vm2035, %v1989
      %2055 = vst.msk [vmem:[%s172 + $0x4c] sm:$0xf] %vm2035, %v1990
      %2056 = vst.msk [vmem:[%s172 + $0x50] sm:$0xf] %vm2035, %v1991
      %2057 = vst.msk [vmem:[%s172 + $0x54] sm:$0xf] %vm2035, %v1992
      %2058 = vst.msk [vmem:[%s172 + $0x58] sm:$0xf] %vm2035, %v1993
      %2059 = vst.msk [vmem:[%s172 + $0x5c] sm:$0xf] %vm2035, %v1994
      %2060 = vst.msk [vmem:[%s172 + $0x60] sm:$0xf] %vm2035, %v1995
      %2061 = vst.msk [vmem:[%s172 + $0x64] sm:$0xf] %vm2035, %v1996
      %2062 = vst.msk [vmem:[%s172 + $0x68] sm:$0xf] %vm2035, %v1997
      %2063 = vst.msk [vmem:[%s172 + $0x6c] sm:$0xf] %vm2035, %v1998
      %2064 = vst.msk [vmem:[%s172 + $0x70] sm:$0xf] %vm2035, %v1999
      %2065 = vst.msk [vmem:[%s172 + $0x74] sm:$0xf] %vm2035, %v2000
      %2066 = vst.msk [vmem:[%s172 + $0x78] sm:$0xf] %vm2035, %v2001
      %2067 = vst.msk [vmem:[%s172 + $0x7c] sm:$0xf] %vm2035, %v2002
      %2068 = vst.msk [vmem:[%s172 + $0x80] sm:$0xf] %vm2035, %v2003
      %2069 = vst.msk [vmem:[%s172 + $0x84] sm:$0xf] %vm2035, %v2004
      %2070 = vst.msk [vmem:[%s172 + $0x88] sm:$0xf] %vm2035, %v2005
      %2071 = vst.msk [vmem:[%s172 + $0x8c] sm:$0xf] %vm2035, %v2006
      %2072 = vst.msk [vmem:[%s172 + $0x90] sm:$0xf] %vm2035, %v2007
      %2073 = vst.msk [vmem:[%s172 + $0x94] sm:$0xf] %vm2035, %v2008
      %2074 = vst.msk [vmem:[%s172 + $0x98] sm:$0xf] %vm2035, %v2009
      %2075 = vst.msk [vmem:[%s172 + $0x9c] sm:$0xf] %vm2035, %v2010
      %2076 = vst.msk [vmem:[%s172 + $0xa0] sm:$0xf] %vm2035, %v2011
      %2077 = vst.msk [vmem:[%s172 + $0xa4] sm:$0xf] %vm2035, %v2012
      %2078 = vst.msk [vmem:[%s172 + $0xa8] sm:$0xf] %vm2035, %v2013
      %2079 = vst.msk [vmem:[%s172 + $0xac] sm:$0xf] %vm2035, %v2014
      %2080 = vst.msk [vmem:[%s172 + $0xb0] sm:$0xf] %vm2035, %v2015
      %2081 = vst.msk [vmem:[%s172 + $0xb4] sm:$0xf] %vm2035, %v2016
      %2082 = vst.msk [vmem:[%s172 + $0xb8] sm:$0xf] %vm2035, %v2017
      %2083 = vst.msk [vmem:[%s172 + $0xbc] sm:$0xf] %vm2035, %v2018
      %2084 = vst.msk [vmem:[%s172 + $0xc0] sm:$0xf] %vm2035, %v2019
      %2085 = vst.msk [vmem:[%s172 + $0xc4] sm:$0xf] %vm2035, %v2020
      %2086 = vst.msk [vmem:[%s172 + $0xc8] sm:$0xf] %vm2035, %v2021
      %2087 = vst.msk [vmem:[%s172 + $0xcc] sm:$0xf] %vm2035, %v2022
      %2088 = vst.msk [vmem:[%s172 + $0xd0] sm:$0xf] %vm2035, %v2023
      %2089 = vst.msk [vmem:[%s172 + $0xd4] sm:$0xf] %vm2035, %v2024
      %2090 = vst.msk [vmem:[%s172 + $0xd8] sm:$0xf] %vm2035, %v2025
      %2091 = vst.msk [vmem:[%s172 + $0xdc] sm:$0xf] %vm2035, %v2026
      %2092 = vst.msk [vmem:[%s172 + $0xe0] sm:$0xf] %vm2035, %v2027
      %2093 = vst.msk [vmem:[%s172 + $0xe4] sm:$0xf] %vm2035, %v2028
      %2094 = vst.msk [vmem:[%s172 + $0xe8] sm:$0xf] %vm2035, %v2029
      %2095 = vst.msk [vmem:[%s172 + $0xec] sm:$0xf] %vm2035, %v2030
      %2096 = vst.msk [vmem:[%s172 + $0xf0] sm:$0xf] %vm2035, %v2031
      %2097 = vst.msk [vmem:[%s172 + $0xf4] sm:$0xf] %vm2035, %v2032
      %2098 = vst.msk [vmem:[%s172 + $0xf8] sm:$0xf] %vm2035, %v2033
      %2099 = vst.msk [vmem:[%s172 + $0xfc] sm:$0xf] %vm2035, %v2034
      %s2100 = smul.u32 64, %s14
      %p2101 = scmp.lt.s32.totalorder %s2100, 1023
      %s2102 = scalar_select %p2101, %s2100, 1023
      %s2103 = smul.addr %s2102, 4
      %s2104 = scalar_lea.vmem %s3, %s2103
      // Predicated region
      $region33: #{tpu_custom_call.1} parent=31 // pred_check
        %p2105 = pneg %p100
      $region34: #{tpu_custom_call.1} parent=31 // pred_check_branch
        %2107 = sbr.rel (%p2105) target = $region36
      $region35: #{tpu_custom_call.1} parent=31 // pred_region
        %s2108 = smul.u32 64, %s14
      $region36: #{tpu_custom_call.1} parent=31 // pred_fallthru
        _
    $region32: #{tpu_custom_call.1} parent=5 // pred_fallthru
      _
    %p2109 = scmp.le.s32.totalorder 2, %s9
    // Predicated region
    $region37: #{tpu_custom_call.1} parent=5 // pred_check
      %p2110 = pneg %p2109
    $region38: #{tpu_custom_call.1} parent=5 // pred_check_branch
      %2112 = sbr.rel (%p2110) target = $region40
    $region39: #{tpu_custom_call.1} parent=5 // pred_region
      %s2113 = ssub.s32 %s9, 2
      // Predicated region
      $region41: #{tpu_custom_call.1} parent=39 // pred_check
        %p2114 = pneg %p106
      $region42: #{tpu_custom_call.1} parent=39 // pred_check_branch
        %2116 = sbr.rel (%p2114) target = $region44
      $region43: #{tpu_custom_call.1} parent=39 // pred_region
        %s2117 = smul.u32 64, %s15
        %p2118 = scmp.lt.s32.totalorder %s2117, 1023
        %s2119 = scalar_select %p2118, %s2117, 1023
        %s2120 = smul.addr %s2119, 4
        %s2121 = scalar_lea.vmem %s3, %s2120
      $region44: #{tpu_custom_call.1} parent=39 // pred_fallthru
        _
    $region40: #{tpu_custom_call.1} parent=5 // pred_fallthru
      _
  $region6: #{tpu_custom_call.1} parent=0 // loop_footer
    %s13 = sadd.s32 1, %s9
  $region7: #{tpu_custom_call.1} parent=0 // loop_footer_branch
    %8 = sbr.rel target = $region3
  $region8: #{tpu_custom_call.1} parent=0 // loop_exit
    _

</llo_original>
